<compile_context>
chip_gen: v7x
topology: tpu7x:2x2x1
jax: 0.10.0
libtpu: 0.0.40
codegen_flags: <defaults>
</compile_context>

<pallas_src>
import numpy as np
import jax
import jax.numpy as jnp
from jax.experimental import pallas as pl
from jax.experimental.pallas import tpu as pltpu

TASK_NUM = 10               # hyper_input_dim
IN0_DIM = 9 + TASK_NUM      # input[0] feature dim = 19
IN1_DIM = 4                 # input[1] feature dim
MLP_IN = 9 + IN1_DIM        # 13
MLP_OUT = 1
E = 32                      # hyper embedding dim (assumed)
H = 32                      # target-MLP hidden dim (assumed)
NB = MLP_IN + 1             # 13 outer-product blocks + 1 block carrying z for the G2 fold
KX = 512                    # NB * E = 448, padded up to a multiple of 128
XIN = IN0_DIM + IN1_DIM + 1 # fused kernel input width: [input0 | input1 | ones] = 24
TB_MAX = 512                # max batch tile (sublane-aligned)


def hyper_mlp_kernel(xin_ref, wenc_ref, gaug_ref, o_ref):
    """One batch tile of the hypernetwork forward (2 MXU matmuls total).

    xin_ref  : (TB, 24)       [input0 | input1 | ones] tile (f32)
    wenc_ref : (24, 2*KX)     fused encoder weight, bf16:
                                cols 0:KX   -> zr_pre (tiled wh + bias via ones row)
                                cols KX:2KX -> x_rep  (0/1 replication + ones block)
    gaug_ref : (KX, 2H+1)     fused generator [gw1-flat -> h_pre | gb1/gw2/gb2 via z block], bf16
    o_ref    : (TB, 1)        output tile (f32)
    """
    x = xin_ref[...].astype(jnp.bfloat16)                                    # (TB, 24)

    # Fused encoder: one matmul produces the relu'd hyper embedding replicated over all
    # outer-product blocks AND the replicated mlp-input columns (no in-kernel slice/concat
    # of the raw inputs; all column selection lives in W_enc).
    enc = jnp.dot(x, wenc_ref[...], preferred_element_type=jnp.float32)      # (TB, 2*KX)
    zr = jnp.maximum(enc[:, :KX], 0.0)        # relu(hx@wh+bh) tiled; block 13 = z; pad = 0
    x_rep = enc[:, KX:]                       # x[:, i] replicated; block 13 = 1; pad = 0

    # Flattened per-sample outer product y[b, i*E+e] = x[b,i] * z[b,e]; block 13 carries z.
    y = (zr * x_rep).astype(jnp.bfloat16)                                    # (TB, KX)

    # Single fused generator matmul: h_pre (incl. b1), w2 and b2 in one MXU pass.
    out = jnp.dot(y, gaug_ref[...], preferred_element_type=jnp.float32)      # (TB, 2H+1)
    h = jnp.maximum(out[:, :H], 0.0)
    w2 = out[:, H:2 * H]
    b2 = out[:, 2 * H:2 * H + 1]
    o_ref[...] = jnp.sum(h * w2, axis=-1, keepdims=True) + b2


def pack_params(params):
    """Host-side (numpy, one-time) packing of raw params into the two fused weights."""
    wh, bh, gw1, gb1, gw2, gb2 = (np.asarray(p, np.float32) for p in params)
    ne = MLP_IN * E                                        # 416
    nz = NB * E                                            # 448

    W = np.zeros((XIN, 2 * KX), np.float32)
    # --- left half: zr_pre = hx @ wh + bh, tiled over NB blocks ---
    W[9:19, :nz] = np.tile(wh, (1, NB))                    # one-hot cols of input0 (9..18)
    W[XIN - 1, :nz] = np.tile(bh.reshape(-1), NB)          # bias via the ones input column
    # --- right half: x_rep[:, i*E+e] = x[:, i], x = concat(input0[:, :9], input1) ---
    R = np.repeat(np.eye(MLP_IN, dtype=np.float32), E, axis=1)   # (13, 416)
    W[0:9, KX:KX + ne] = R[:9]
    W[19:23, KX:KX + ne] = R[9:]
    W[XIN - 1, KX + ne:KX + nz] = 1.0                      # block 13 of x_rep = 1 (G2 fold)
    # columns 448:512 of both halves stay zero (K padding contributes nothing).

    G = np.zeros((KX, 2 * H + 1), np.float32)
    G[:ne, :H] = gw1.reshape(ne, H)                        # flattened layer-1 generator
    G[ne:nz, :H] = gb1                                     # b1 added via the z block
    G[ne:nz, H:2 * H] = gw2                                # w2 via the z block
    G[ne:nz, 2 * H:] = gb2                                 # b2 via the z block

    return jnp.asarray(W, jnp.bfloat16), jnp.asarray(G, jnp.bfloat16)


def _choose_tb(B):
    """Batch tile: multiple of 8, capped at TB_MAX, >=2 grid tiles for moderate batches."""
    bp8 = ((B + 7) // 8) * 8
    if bp8 <= 16:
        return bp8
    half = ((bp8 + 15) // 16) * 8          # ceil(bp8/2) rounded up to a sublane multiple
    return min(TB_MAX, half)


def flatten_net_forward(input0, input1, w_enc, g_aug):
    """FlattenNet.forward: input is the pair (input0, input1). Returns (B, 1)."""
    B = input0.shape[0]
    ones = jnp.ones((B, 1), input0.dtype)
    xin = jnp.concatenate([input0, input1, ones], axis=-1)            # (B, 24)

    tb = _choose_tb(B)
    bp = pl.cdiv(B, tb) * tb
    if bp != B:                                   # ragged batch: zero-pad (padded rows -> 0)
        xin = jnp.pad(xin, ((0, bp - B), (0, 0)))

    out = pl.pallas_call(
        hyper_mlp_kernel,
        out_shape=jax.ShapeDtypeStruct((bp, MLP_OUT), jnp.float32),
        grid=(bp // tb,),
        in_specs=[
            pl.BlockSpec((tb, XIN), lambda b: (b, 0)),                # fused input: batch-tiled
            pl.BlockSpec((XIN, 2 * KX), lambda b: (0, 0)),            # W_enc (replicated)
            pl.BlockSpec((KX, 2 * H + 1), lambda b: (0, 0)),          # G_aug (replicated)
        ],
        out_specs=pl.BlockSpec((tb, MLP_OUT), lambda b: (b, 0)),
        compiler_params=pltpu.CompilerParams(
            dimension_semantics=("parallel",)),
    )(xin, w_enc, g_aug)
    return out[:B]


def reference_forward(input0, input1, params):
    """Pure-JAX f32 reference of the same math (independent contraction order)."""
    wh, bh, gw1, gb1, gw2, gb2 = params
    hx = input0[..., -TASK_NUM:]
    x = jnp.concatenate([input0[..., :9], input1], axis=-1)
    z = jax.nn.relu(hx @ wh + bh)                                  # (B, E)
    w1 = jnp.einsum('be,ieh->bih', z, gw1)                         # (B, 13, H)
    b1 = z @ gb1                                                   # (B, H)
    h = jax.nn.relu(jnp.einsum('bi,bih->bh', x, w1) + b1)          # (B, H)
    w2 = z @ gw2                                                   # (B, H)
    b2 = z @ gb2                                                   # (B, 1)
    return jnp.sum(h * w2, axis=-1, keepdims=True) + b2


def init_params(key):
    k = jax.random.split(key, 6)
    scale = 0.1
    wh = scale * jax.random.normal(k[0], (TASK_NUM, E), jnp.float32)
    bh = scale * jax.random.normal(k[1], (1, E), jnp.float32)
    gw1 = scale * jax.random.normal(k[2], (MLP_IN, E, H), jnp.float32)
    gb1 = scale * jax.random.normal(k[3], (E, H), jnp.float32)
    gw2 = scale * jax.random.normal(k[4], (E, H), jnp.float32)
    gb2 = scale * jax.random.normal(k[5], (E, MLP_OUT), jnp.float32)
    return (wh, bh, gw1, gb1, gw2, gb2)


if __name__ == "__main__":
    key = jax.random.PRNGKey(0)
    kp, k0, k1, k2 = jax.random.split(key, 4)

    # Deliberately not a multiple of the tile to exercise padding; grid length = 2.
    B = 500
    feats = jax.random.normal(k0, (B, 9), jnp.float32)
    task_ids = jax.random.randint(k1, (B,), 0, TASK_NUM)
    onehot = jax.nn.one_hot(task_ids, TASK_NUM, dtype=jnp.float32)
    input0 = jnp.concatenate([feats, onehot], axis=-1)             # (B, 19)
    input1 = jax.random.normal(k2, (B, IN1_DIM), jnp.float32)      # (B, 4)

    params = init_params(kp)
    # Packed once per parameter set (host-side numpy), NOT per forward call.
    w_enc, g_aug = pack_params(params)

    fwd = jax.jit(flatten_net_forward)
    out = jax.block_until_ready(fwd(input0, input1, w_enc, g_aug))
    assert out.shape == (B, MLP_OUT)

    ref = reference_forward(input0, input1, params)
    # Kernel uses bf16 MXU operands with f32 accumulation -> loosened tolerance vs f32 ref.
    np.testing.assert_allclose(np.asarray(out), np.asarray(ref), rtol=5e-2, atol=2e-2)

    print("KERNEL_OK")
</pallas_src>

<mosaic_0001>
module attributes {stable_mosaic.version = 11 : i64} {
  func.func @hyper_mlp_kernel(%arg0: i32, %arg1: memref<256x24xf32, #tpu.memory_space<vmem>>, %arg2: memref<24x1024xbf16, #tpu.memory_space<vmem>>, %arg3: memref<512x65xbf16, #tpu.memory_space<vmem>>, %arg4: memref<256x1xf32, #tpu.memory_space<vmem>>) attributes {dimension_semantics = [#tpu.dimension_semantics<parallel>], iteration_bounds = array<i64: 2>, scalar_prefetch = 0 : i64, scratch_operands = 0 : i64, tpu.core_type = #tpu.core_type<tc>, window_params = [{transform_indices = @transform_0, window_bounds = array<i64: 256, 24>}, {pipeline_mode = #tpu.pipeline_mode<synchronous>, transform_indices = @transform_1, window_bounds = array<i64: 24, 1024>}, {pipeline_mode = #tpu.pipeline_mode<synchronous>, transform_indices = @transform_2, window_bounds = array<i64: 512, 65>}, {transform_indices = @transform_3, window_bounds = array<i64: 256, 1>}]} {
    %c0 = arith.constant 0 : index
    %c0_0 = arith.constant 0 : index
    %0 = vector.load %arg1[%c0, %c0_0] : memref<256x24xf32, #tpu.memory_space<vmem>>, vector<256x24xf32>
    %1 = arith.truncf %0 : vector<256x24xf32> to vector<256x24xbf16>
    %c0_1 = arith.constant 0 : index
    %c0_2 = arith.constant 0 : index
    %2 = vector.load %arg2[%c0_1, %c0_2] : memref<24x1024xbf16, #tpu.memory_space<vmem>>, vector<24x1024xbf16>
    %cst = arith.constant dense<0.000000e+00> : vector<256x1024xf32>
    %3 = tpu.matmul %1, %2, %cst {dimension_numbers = #tpu.dot_dimension_numbers<[1], [0], [0], [1], [0, 0, 1, 1], [], []>} : vector<256x24xbf16>, vector<24x1024xbf16>, vector<256x1024xf32> -> vector<256x1024xf32>
    %4 = vector.extract_strided_slice %3 {offsets = [0, 0], sizes = [256, 512], strides = [1, 1]} : vector<256x1024xf32> to vector<256x512xf32>
    %cst_3 = arith.constant 0.000000e+00 : f32
    %5 = vector.broadcast %cst_3 : f32 to vector<256x512xf32>
    %6 = arith.maximumf %4, %5 : vector<256x512xf32>
    %7 = vector.extract_strided_slice %3 {offsets = [0, 512], sizes = [256, 512], strides = [1, 1]} : vector<256x1024xf32> to vector<256x512xf32>
    %8 = arith.mulf %6, %7 : vector<256x512xf32>
    %9 = arith.truncf %8 : vector<256x512xf32> to vector<256x512xbf16>
    %c0_4 = arith.constant 0 : index
    %c0_5 = arith.constant 0 : index
    %10 = vector.load %arg3[%c0_4, %c0_5] : memref<512x65xbf16, #tpu.memory_space<vmem>>, vector<512x65xbf16>
    %cst_6 = arith.constant dense<0.000000e+00> : vector<256x65xf32>
    %11 = tpu.matmul %9, %10, %cst_6 {dimension_numbers = #tpu.dot_dimension_numbers<[1], [0], [0], [1], [0, 0, 1, 1], [], []>} : vector<256x512xbf16>, vector<512x65xbf16>, vector<256x65xf32> -> vector<256x65xf32>
    %12 = vector.extract_strided_slice %11 {offsets = [0, 0], sizes = [256, 32], strides = [1, 1]} : vector<256x65xf32> to vector<256x32xf32>
    %cst_7 = arith.constant 0.000000e+00 : f32
    %13 = vector.broadcast %cst_7 : f32 to vector<256x32xf32>
    %14 = arith.maximumf %12, %13 : vector<256x32xf32>
    %15 = vector.extract_strided_slice %11 {offsets = [0, 32], sizes = [256, 32], strides = [1, 1]} : vector<256x65xf32> to vector<256x32xf32>
    %16 = vector.extract_strided_slice %11 {offsets = [0, 64], sizes = [256, 1], strides = [1, 1]} : vector<256x65xf32> to vector<256x1xf32>
    %17 = arith.mulf %14, %15 : vector<256x32xf32>
    %cst_8 = arith.constant dense<0.000000e+00> : vector<256xf32>
    %18 = vector.multi_reduction <add>, %17, %cst_8 [1] : vector<256x32xf32> to vector<256xf32>
    %19 = vector.shape_cast %18 : vector<256xf32> to vector<256x1xf32>
    %20 = arith.addf %19, %16 : vector<256x1xf32>
    %c0_9 = arith.constant 0 : index
    %c0_10 = arith.constant 0 : index
    %21 = vector.load %arg4[%c0_9, %c0_10] : memref<256x1xf32, #tpu.memory_space<vmem>>, vector<256x1xf32>
    tpu.vector_store %arg4[%c0_9, %c0_10], %20 {strides = array<i32>} : memref<256x1xf32, #tpu.memory_space<vmem>>, vector<256x1xf32>,
    return
  }
  func.func @transform_0(%arg0: i32) -> (i32, i32) {
    %c0_i32 = arith.constant 0 : i32
    %c0_i32_0 = arith.constant 0 : i32
    return %arg0, %c0_i32 : i32, i32
  }
  func.func @transform_1(%arg0: i32) -> (i32, i32) {
    %c0_i32 = arith.constant 0 : i32
    %c0_i32_0 = arith.constant 0 : i32
    %c0_i32_1 = arith.constant 0 : i32
    return %c0_i32, %c0_i32_0 : i32, i32
  }
  func.func @transform_2(%arg0: i32) -> (i32, i32) {
    %c0_i32 = arith.constant 0 : i32
    %c0_i32_0 = arith.constant 0 : i32
    %c0_i32_1 = arith.constant 0 : i32
    return %c0_i32, %c0_i32_0 : i32, i32
  }
  func.func @transform_3(%arg0: i32) -> (i32, i32) {
    %c0_i32 = arith.constant 0 : i32
    %c0_i32_0 = arith.constant 0 : i32
    return %arg0, %c0_i32 : i32, i32
  }
}

</mosaic_0001>

<llo_original>
// kernel: flatten_net_forward.1
$region0: #{flatten_net_forward.1}
  #allocation0 [shape = 'u32[]', space=smem, size = 0x4, offset = 0x4, fixed_abs, tag = 'smem constant byte address 0x4 - core index']
  #allocation1 [shape = 'u32[144,128]{1,0:T(1,128)}', space=vmem, size = 0x12000, scoped, tag = 'internal scratch']
  %s0 = inlined_call_operand.vmem [shape: f32[512,24], index: 0, kind: input, shape index: {}]
  %s1 = inlined_call_operand.vmem [shape: bf16[24,1024], index: 1, kind: input, shape index: {}]
  %s2 = inlined_call_operand.vmem [shape: bf16[512,65], index: 2, kind: input, shape index: {}]
  %s3 = inlined_call_operand.vmem [shape: f32[512,1], index: 3, kind: output, shape index: {}]
  %s4 = sld [smem:[#allocation0]]
  $region45: #{flatten_net_forward.1} parent=0
    _
  %s6 = ssub.s32 1, %s4
  %s7 = scalar_select 0, %s6, %s4
  loop: start=0, step=1, limit=4
  $region2: #{flatten_net_forward.1} parent=0 // loop_pre_header
    _
  $region3: #{flatten_net_forward.1} parent=0 // loop_header
    %s9 = sphi 0, %s13
    %p10 = scmp.ge.s32.totalorder %s9, 4
    %s19 = sphi 0, %s21
    %s22 = sphi 0, %s19
    %s23 = sphi 0, %s22
    %s39 = sphi 0, %s23
    %s43 = sphi 0, %s43
    %s45 = sphi 0, %s43
    %s46 = sphi 0, %s45
    %s60 = sphi 0, %s46
    %s64 = sphi 0, %s64
    %s66 = sphi 0, %s64
    %s67 = sphi 0, %s66
    %s81 = sphi 0, %s67
    %s87 = sphi 0, %s89
    %s90 = sphi 0, %s87
    %s91 = sphi 0, %s90
    %s107 = sphi 0, %s91
  $region4: #{flatten_net_forward.1} parent=0 // loop_header_branch
    %12 = sbr.rel (%p10) target = $region8
  $region5: #{flatten_net_forward.1} parent=0 // loop_body
    %s14 = ssub.s32 %s9, 1
    %s15 = ssub.s32 %s9, 2
    %s16 = sadd.s32 %s9, 1
    %s17 = ssub.s32 %s9, %s16
    %p18 = scmp.eq.s32.totalorder %s17, 0
    %s20 = sadd.s32 %s19, 1
    %s21 = scalar_select %p18, %s19, %s20
    %p24 = pneg %p18
    %p25 = scmp.eq.s32.totalorder %s9, 1
    %p26 = por %p24, %p25
    %p27 = scmp.ne.s32.totalorder %s19, %s22
    %p28 = scmp.eq.s32.totalorder %s9, 0
    %p29 = por %p27, %p28
    %p30 = scmp.ne.s32.totalorder %s19, %s22
    %p31 = scmp.eq.s32.totalorder %s14, 1
    %p32 = por %p30, %p31
    %p33 = scmp.ne.s32.totalorder %s22, %s23
    %p34 = scmp.eq.s32.totalorder %s14, 0
    %p35 = por %p33, %p34
    %p36 = scmp.ne.s32.totalorder %s22, %s23
    %p37 = scmp.eq.s32.totalorder %s15, 1
    %p38 = por %p36, %p37
    %p40 = scmp.ne.s32.totalorder %s23, %s39
    %p41 = scmp.eq.s32.totalorder %s15, 0
    %p42 = por %p40, %p41
    %s44 = sadd.s32 %s43, 1
    %p47 = scmp.eq.s32.totalorder %s9, 1
    %p48 = scmp.ne.s32.totalorder %s43, %s45
    %p49 = scmp.eq.s32.totalorder %s9, 0
    %p50 = por %p48, %p49
    %p51 = scmp.ne.s32.totalorder %s43, %s45
    %p52 = scmp.eq.s32.totalorder %s14, 1
    %p53 = por %p51, %p52
    %p54 = scmp.ne.s32.totalorder %s45, %s46
    %p55 = scmp.eq.s32.totalorder %s14, 0
    %p56 = por %p54, %p55
    %p57 = scmp.ne.s32.totalorder %s45, %s46
    %p58 = scmp.eq.s32.totalorder %s15, 1
    %p59 = por %p57, %p58
    %p61 = scmp.ne.s32.totalorder %s46, %s60
    %p62 = scmp.eq.s32.totalorder %s15, 0
    %p63 = por %p61, %p62
    %s65 = sadd.s32 %s64, 1
    %p68 = scmp.eq.s32.totalorder %s9, 1
    %p69 = scmp.ne.s32.totalorder %s64, %s66
    %p70 = scmp.eq.s32.totalorder %s9, 0
    %p71 = por %p69, %p70
    %p72 = scmp.ne.s32.totalorder %s64, %s66
    %p73 = scmp.eq.s32.totalorder %s14, 1
    %p74 = por %p72, %p73
    %p75 = scmp.ne.s32.totalorder %s66, %s67
    %p76 = scmp.eq.s32.totalorder %s14, 0
    %p77 = por %p75, %p76
    %p78 = scmp.ne.s32.totalorder %s66, %s67
    %p79 = scmp.eq.s32.totalorder %s15, 1
    %p80 = por %p78, %p79
    %p82 = scmp.ne.s32.totalorder %s67, %s81
    %p83 = scmp.eq.s32.totalorder %s15, 0
    %p84 = por %p82, %p83
    %s85 = ssub.s32 %s9, %s16
    %p86 = scmp.eq.s32.totalorder %s85, 0
    %s88 = sadd.s32 %s87, 1
    %s89 = scalar_select %p86, %s87, %s88
    %p92 = pneg %p86
    %p93 = scmp.eq.s32.totalorder %s9, 1
    %p94 = por %p92, %p93
    %p95 = scmp.ne.s32.totalorder %s87, %s90
    %p96 = scmp.eq.s32.totalorder %s9, 0
    %p97 = por %p95, %p96
    %p98 = scmp.ne.s32.totalorder %s87, %s90
    %p99 = scmp.eq.s32.totalorder %s14, 1
    %p100 = por %p98, %p99
    %p101 = scmp.ne.s32.totalorder %s90, %s91
    %p102 = scmp.eq.s32.totalorder %s14, 0
    %p103 = por %p101, %p102
    %p104 = scmp.ne.s32.totalorder %s90, %s91
    %p105 = scmp.eq.s32.totalorder %s15, 1
    %p106 = por %p104, %p105
    %p108 = scmp.ne.s32.totalorder %s91, %s107
    %p109 = scmp.eq.s32.totalorder %s15, 0
    %p110 = por %p108, %p109
    %p111 = scmp.le.s32.totalorder 1, %s9
    %p112 = scmp.lt.s32.totalorder %s9, 3
    %p113 = pnand %p111, %p112
    %p114 = pneg %p113
    // Predicated region
    $region9: #{flatten_net_forward.1} parent=5 // pred_check
      _
    $region10: #{flatten_net_forward.1} parent=5 // pred_check_branch
      %116 = sbr.rel (%p113) target = $region12
    $region11: #{flatten_net_forward.1} parent=5 // pred_region
      %s117 = ssub.s32 %s9, 1
      // Predicated region
      $region13: #{flatten_net_forward.1} parent=11 // pred_check
        %p118 = pneg %p56
      $region14: #{flatten_net_forward.1} parent=11 // pred_check_branch
        %120 = sbr.rel (%p118) target = $region16
      $region15: #{flatten_net_forward.1} parent=11 // pred_region
        _
      $region16: #{flatten_net_forward.1} parent=11 // pred_fallthru
        _
      // Predicated region
      $region17: #{flatten_net_forward.1} parent=11 // pred_check
        %p121 = pneg %p77
      $region18: #{flatten_net_forward.1} parent=11 // pred_check_branch
        %123 = sbr.rel (%p121) target = $region20
      $region19: #{flatten_net_forward.1} parent=11 // pred_region
        _
      $region20: #{flatten_net_forward.1} parent=11 // pred_fallthru
        _
    $region12: #{flatten_net_forward.1} parent=5 // pred_fallthru
      _
    %p124 = scmp.lt.s32.totalorder %s9, 2
    // Predicated region
    $region21: #{flatten_net_forward.1} parent=5 // pred_check
      %p125 = pneg %p124
    $region22: #{flatten_net_forward.1} parent=5 // pred_check_branch
      %127 = sbr.rel (%p125) target = $region24
    $region23: #{flatten_net_forward.1} parent=5 // pred_region
      // Predicated region
      $region25: #{flatten_net_forward.1} parent=23 // pred_check
        %p128 = pneg %p29
      $region26: #{flatten_net_forward.1} parent=23 // pred_check_branch
        %130 = sbr.rel (%p128) target = $region28
      $region27: #{flatten_net_forward.1} parent=23 // pred_region
        %s131 = smul.u32 32, %s9
        %p132 = scmp.lt.s32.totalorder %s131, 63
        %s133 = scalar_select %p132, %s131, 63
        %s134 = smul.addr %s133, 8
        %s135 = scalar_lea.vmem %s0, %s134
        %s136 = smul.u32 32, %s9
      $region28: #{flatten_net_forward.1} parent=23 // pred_fallthru
        _
    $region24: #{flatten_net_forward.1} parent=5 // pred_fallthru
      _
    %p137 = scmp.le.s32.totalorder 1, %s9
    %p138 = scmp.lt.s32.totalorder %s9, 3
    %p139 = pnand %p137, %p138
    %p140 = pneg %p139
    // Predicated region
    $region29: #{flatten_net_forward.1} parent=5 // pred_check
      _
    $region30: #{flatten_net_forward.1} parent=5 // pred_check_branch
      %142 = sbr.rel (%p139) target = $region32
    $region31: #{flatten_net_forward.1} parent=5 // pred_region
      %s143 = ssub.s32 %s9, 1
      %s144 = smul.u32 32, %s14
      %p145 = scmp.lt.s32.totalorder %s144, 63
      %s146 = scalar_select %p145, %s144, 63
      %s147 = smul.addr %s146, 8
      %s148 = scalar_lea.vmem %s0, %s147
      %p149 = pneg %p35
      %p150 = pneg %p32
      %p151 = pneg %p56
      %p152 = pneg %p53
      %p153 = pneg %p77
      %p154 = pneg %p74
      %p155 = pneg %p103
      %p156 = pneg %p100
      %s157 = smul.u32 32, %s14
      %p158 = scmp.lt.s32.totalorder %s157, 63
      %s159 = scalar_select %p158, %s157, 63
      %s160 = smul.addr %s159, 8
      %s161 = scalar_lea.vmem %s3, %s160
      %s162 = smul.u32 32, %s14
      %p163 = scmp.lt.s32.totalorder %s162, 63
      %s164 = scalar_select %p163, %s162, 63
      %s165 = smul.addr %s164, 8
      %s166 = scalar_lea.vmem %s0, %s165
      %s167 = smul.u32 32, %s14
      %s168 = smul.u32 32, %s14
      %p169 = scmp.lt.s32.totalorder %s168, 63
      %s170 = scalar_select %p169, %s168, 63
      %s171 = smul.addr %s170, 8
      %s172 = scalar_lea.vmem %s3, %s171
      %s173 = smul.u32 32, %s14
      %v175 = vld [vmem:[%s166] sm:$0xff]
      %v176 = vld [vmem:[%s166 + $0x8] sm:$0xff]
      %v177 = vld [vmem:[%s166 + $0x10] sm:$0xff]
      %v178 = vld [vmem:[%s166 + $0x18] sm:$0xff]
      %v179 = vld [vmem:[%s166 + $0x20] sm:$0xff]
      %v180 = vld [vmem:[%s166 + $0x28] sm:$0xff]
      %v181 = vld [vmem:[%s166 + $0x30] sm:$0xff]
      %v182 = vld [vmem:[%s166 + $0x38] sm:$0xff]
      %v183 = vld [vmem:[%s166 + $0x40] sm:$0xff]
      %v184 = vld [vmem:[%s166 + $0x48] sm:$0xff]
      %v185 = vld [vmem:[%s166 + $0x50] sm:$0xff]
      %v186 = vld [vmem:[%s166 + $0x58] sm:$0xff]
      %v187 = vld [vmem:[%s166 + $0x60] sm:$0xff]
      %v188 = vld [vmem:[%s166 + $0x68] sm:$0xff]
      %v189 = vld [vmem:[%s166 + $0x70] sm:$0xff]
      %v190 = vld [vmem:[%s166 + $0x78] sm:$0xff]
      %v191 = vld [vmem:[%s166 + $0x80] sm:$0xff]
      %v192 = vld [vmem:[%s166 + $0x88] sm:$0xff]
      %v193 = vld [vmem:[%s166 + $0x90] sm:$0xff]
      %v194 = vld [vmem:[%s166 + $0x98] sm:$0xff]
      %v195 = vld [vmem:[%s166 + $0xa0] sm:$0xff]
      %v196 = vld [vmem:[%s166 + $0xa8] sm:$0xff]
      %v197 = vld [vmem:[%s166 + $0xb0] sm:$0xff]
      %v198 = vld [vmem:[%s166 + $0xb8] sm:$0xff]
      %v199 = vld [vmem:[%s166 + $0xc0] sm:$0xff]
      %v200 = vld [vmem:[%s166 + $0xc8] sm:$0xff]
      %v201 = vld [vmem:[%s166 + $0xd0] sm:$0xff]
      %v202 = vld [vmem:[%s166 + $0xd8] sm:$0xff]
      %v203 = vld [vmem:[%s166 + $0xe0] sm:$0xff]
      %v204 = vld [vmem:[%s166 + $0xe8] sm:$0xff]
      %v205 = vld [vmem:[%s166 + $0xf0] sm:$0xff]
      %v206 = vld [vmem:[%s166 + $0xf8] sm:$0xff]
      %v207 = vpack.c.bf16 %v176, %v175
      %v208 = vpack.c.bf16 %v178, %v177
      %v209 = vpack.c.bf16 %v180, %v179
      %v210 = vpack.c.bf16 %v182, %v181
      %v211 = vpack.c.bf16 %v184, %v183
      %v212 = vpack.c.bf16 %v186, %v185
      %v213 = vpack.c.bf16 %v188, %v187
      %v214 = vpack.c.bf16 %v190, %v189
      %v215 = vpack.c.bf16 %v192, %v191
      %v216 = vpack.c.bf16 %v194, %v193
      %v217 = vpack.c.bf16 %v196, %v195
      %v218 = vpack.c.bf16 %v198, %v197
      %v219 = vpack.c.bf16 %v200, %v199
      %v220 = vpack.c.bf16 %v202, %v201
      %v221 = vpack.c.bf16 %v204, %v203
      %v222 = vpack.c.bf16 %v206, %v205
      %v223 = vld [vmem:[%s1] sm:$0xff]
      %v224 = vld [vmem:[%s1 + $0x8] sm:$0xff]
      %v225 = vld [vmem:[%s1 + $0x10] sm:$0xff]
      %v226 = vld [vmem:[%s1 + $0x18] sm:$0xff]
      %v227 = vld [vmem:[%s1 + $0x20] sm:$0xff]
      %v228 = vld [vmem:[%s1 + $0x28] sm:$0xff]
      %v229 = vld [vmem:[%s1 + $0x30] sm:$0xff]
      %v230 = vld [vmem:[%s1 + $0x38] sm:$0xff]
      %v231 = vld [vmem:[%s1 + $0x40] sm:$0xff]
      %v232 = vld [vmem:[%s1 + $0x48] sm:$0xff]
      %v233 = vld [vmem:[%s1 + $0x50] sm:$0xff]
      %v234 = vld [vmem:[%s1 + $0x58] sm:$0xff]
      %v247 = vunpack.c.l.b16 %v223
      %v248 = vunpack.c.h.b16 %v223
      %v249 = vunpack.c.l.b16 %v224
      %v250 = vunpack.c.h.b16 %v224
      %v251 = vunpack.c.l.b16 %v225
      %v252 = vunpack.c.h.b16 %v225
      %v253 = vunpack.c.l.b16 %v226
      %v254 = vunpack.c.h.b16 %v226
      %v255 = vunpack.c.l.b16 %v227
      %v256 = vunpack.c.h.b16 %v227
      %v257 = vunpack.c.l.b16 %v228
      %v258 = vunpack.c.h.b16 %v228
      %v259 = vunpack.c.l.b16 %v229
      %v260 = vunpack.c.h.b16 %v229
      %v261 = vunpack.c.l.b16 %v230
      %v262 = vunpack.c.h.b16 %v230
      %v263 = vunpack.c.l.b16 %v231
      %v264 = vunpack.c.h.b16 %v231
      %v265 = vunpack.c.l.b16 %v232
      %v266 = vunpack.c.h.b16 %v232
      %v267 = vunpack.c.l.b16 %v233
      %v268 = vunpack.c.h.b16 %v233
      %v269 = vunpack.c.l.b16 %v234
      %v270 = vunpack.c.h.b16 %v234
      %v271 = vpack.c.b16 %v255, %v247
      %v272 = vpack.c.b16 %v256, %v248
      %v273 = vpack.c.b16 %v257, %v249
      %v274 = vpack.c.b16 %v258, %v250
      %v275 = vpack.c.b16 %v259, %v251
      %v276 = vpack.c.b16 %v260, %v252
      %v277 = vpack.c.b16 %v261, %v253
      %v278 = vpack.c.b16 %v262, %v254
      %v279 = vpack.c.b16 %v263, %v263
      %v280 = vpack.c.b16 %v264, %v264
      %v281 = vpack.c.b16 %v265, %v265
      %v282 = vpack.c.b16 %v266, %v266
      %v283 = vpack.c.b16 %v267, %v267
      %v284 = vpack.c.b16 %v268, %v268
      %v285 = vpack.c.b16 %v269, %v269
      %v286 = vpack.c.b16 %v270, %v270
      %vm295 = vcmask 195584
      %v297 = vsel %vm295, %v207, 0
      %v300 = vsel %vm295, %v208, 0
      %v303 = vsel %vm295, %v209, 0
      %v306 = vsel %vm295, %v210, 0
      %v309 = vsel %vm295, %v211, 0
      %v312 = vsel %vm295, %v212, 0
      %v315 = vsel %vm295, %v213, 0
      %v318 = vsel %vm295, %v214, 0
      %v321 = vsel %vm295, %v215, 0
      %v324 = vsel %vm295, %v216, 0
      %v327 = vsel %vm295, %v217, 0
      %v330 = vsel %vm295, %v218, 0
      %v333 = vsel %vm295, %v219, 0
      %v336 = vsel %vm295, %v220, 0
      %v339 = vsel %vm295, %v221, 0
      %v342 = vsel %vm295, %v222, 0
      %vm344 = vcmask 1043456
      %v346 = vsel %vm344, %v279, 0
      %v349 = vsel %vm344, %v280, 0
      %v352 = vsel %vm344, %v281, 0
      %v355 = vsel %vm344, %v282, 0
      %v358 = vsel %vm344, %v283, 0
      %v361 = vsel %vm344, %v284, 0
      %v364 = vsel %vm344, %v285, 0
      %v367 = vsel %vm344, %v286, 0
      %369 = vmatprep.subr.bf16.mxu0 %v272
      %370 = vmatpush1.bf16.msra.mxu0 %v271
      %371 = vmatprep.subr.bf16.mxu0 %v349
      %372 = vmatpush1.bf16.msra.mxu0 %v346
      %373 = vmatprep.subr.bf16.mxu0 0
      %374 = vmatpush1.bf16.msra.mxu0 0
      %375 = vmatprep.subr.bf16.mxu0 0
      %376 = vmatpush1.bf16.msra.mxu0 0
      %377 = vmatprep.subr.bf16.mxu0 0
      %378 = vmatpush1.bf16.msra.mxu0 0
      %379 = vmatprep.subr.bf16.mxu0 0
      %380 = vmatpush1.bf16.msra.mxu0 0
      %381 = vmatprep.subr.bf16.mxu0 0
      %382 = vmatpush1.bf16.msra.mxu0 0
      %383 = vmatprep.subr.bf16.mxu0 0
      %384 = vmatpush1.bf16.msra.mxu0 0
      %385 = vmatprep.subr.bf16.mxu0 0
      %386 = vmatpush1.bf16.msra.mxu0 0
      %387 = vmatprep.subr.bf16.mxu0 0
      %388 = vmatpush1.bf16.msra.mxu0 0
      %389 = vmatprep.subr.bf16.mxu0 0
      %390 = vmatpush1.bf16.msra.mxu0 0
      %391 = vmatprep.subr.bf16.mxu0 0
      %392 = vmatpush1.bf16.msra.mxu0 0
      %393 = vmatprep.subr.bf16.mxu0 0
      %394 = vmatpush1.bf16.msra.mxu0 0
      %395 = vmatprep.subr.bf16.mxu0 0
      %396 = vmatpush1.bf16.msra.mxu0 0
      %397 = vmatprep.subr.bf16.mxu0 0
      %398 = vmatpush1.bf16.msra.mxu0 0
      %399 = vmatprep.subr.bf16.mxu0 0
      %400 = vmatpush1.bf16.msra.mxu0 0
      %401 = vmatprep.mubr.bf16.mxu0 0
      %402 = vmatmul.mubr.bf16.gmra.mrb[0].mxu0 %v297
      %v403 = vpop.f32.mrb[0].mxu0
      %v404 = vadd.f32 0.0, %v403
      %v405 = vpop.f32.mrb[0].mxu0
      %v406 = vadd.f32 0.0, %v405
      %v407 = vpop.f32.mrb[0].mxu0
      %v408 = vadd.f32 0.0, %v407
      %v409 = vpop.f32.mrb[0].mxu0
      %v410 = vadd.f32 0.0, %v409
      %411 = vmatprep.mubr.bf16.mxu0 0
      %412 = vmatmul.mubr.bf16.gmra.mrb[0].mxu0 %v300
      %v413 = vpop.f32.mrb[0].mxu0
      %v414 = vadd.f32 0.0, %v413
      %v415 = vpop.f32.mrb[0].mxu0
      %v416 = vadd.f32 0.0, %v415
      %v417 = vpop.f32.mrb[0].mxu0
      %v418 = vadd.f32 0.0, %v417
      %v419 = vpop.f32.mrb[0].mxu0
      %v420 = vadd.f32 0.0, %v419
      %421 = vmatprep.mubr.bf16.mxu0 0
      %422 = vmatmul.mubr.bf16.gmra.mrb[0].mxu0 %v303
      %v423 = vpop.f32.mrb[0].mxu0
      %v424 = vadd.f32 0.0, %v423
      %v425 = vpop.f32.mrb[0].mxu0
      %v426 = vadd.f32 0.0, %v425
      %v427 = vpop.f32.mrb[0].mxu0
      %v428 = vadd.f32 0.0, %v427
      %v429 = vpop.f32.mrb[0].mxu0
      %v430 = vadd.f32 0.0, %v429
      %431 = vmatprep.mubr.bf16.mxu0 0
      %432 = vmatmul.mubr.bf16.gmra.mrb[0].mxu0 %v306
      %v433 = vpop.f32.mrb[0].mxu0
      %v434 = vadd.f32 0.0, %v433
      %v435 = vpop.f32.mrb[0].mxu0
      %v436 = vadd.f32 0.0, %v435
      %v437 = vpop.f32.mrb[0].mxu0
      %v438 = vadd.f32 0.0, %v437
      %v439 = vpop.f32.mrb[0].mxu0
      %v440 = vadd.f32 0.0, %v439
      %441 = vmatprep.mubr.bf16.mxu0 0
      %442 = vmatmul.mubr.bf16.gmra.mrb[0].mxu0 %v309
      %v443 = vpop.f32.mrb[0].mxu0
      %v444 = vadd.f32 0.0, %v443
      %v445 = vpop.f32.mrb[0].mxu0
      %v446 = vadd.f32 0.0, %v445
      %v447 = vpop.f32.mrb[0].mxu0
      %v448 = vadd.f32 0.0, %v447
      %v449 = vpop.f32.mrb[0].mxu0
      %v450 = vadd.f32 0.0, %v449
      %451 = vmatprep.mubr.bf16.mxu0 0
      %452 = vmatmul.mubr.bf16.gmra.mrb[0].mxu0 %v312
      %v453 = vpop.f32.mrb[0].mxu0
      %v454 = vadd.f32 0.0, %v453
      %v455 = vpop.f32.mrb[0].mxu0
      %v456 = vadd.f32 0.0, %v455
      %v457 = vpop.f32.mrb[0].mxu0
      %v458 = vadd.f32 0.0, %v457
      %v459 = vpop.f32.mrb[0].mxu0
      %v460 = vadd.f32 0.0, %v459
      %461 = vmatprep.mubr.bf16.mxu0 0
      %462 = vmatmul.mubr.bf16.gmra.mrb[0].mxu0 %v315
      %v463 = vpop.f32.mrb[0].mxu0
      %v464 = vadd.f32 0.0, %v463
      %v465 = vpop.f32.mrb[0].mxu0
      %v466 = vadd.f32 0.0, %v465
      %v467 = vpop.f32.mrb[0].mxu0
      %v468 = vadd.f32 0.0, %v467
      %v469 = vpop.f32.mrb[0].mxu0
      %v470 = vadd.f32 0.0, %v469
      %471 = vmatprep.mubr.bf16.mxu0 0
      %472 = vmatmul.mubr.bf16.gmra.mrb[0].mxu0 %v318
      %v473 = vpop.f32.mrb[0].mxu0
      %v474 = vadd.f32 0.0, %v473
      %v475 = vpop.f32.mrb[0].mxu0
      %v476 = vadd.f32 0.0, %v475
      %v477 = vpop.f32.mrb[0].mxu0
      %v478 = vadd.f32 0.0, %v477
      %v479 = vpop.f32.mrb[0].mxu0
      %v480 = vadd.f32 0.0, %v479
      %481 = vmatprep.mubr.bf16.mxu0 0
      %482 = vmatmul.mubr.bf16.gmra.mrb[0].mxu0 %v321
      %v483 = vpop.f32.mrb[0].mxu0
      %v484 = vadd.f32 0.0, %v483
      %v485 = vpop.f32.mrb[0].mxu0
      %v486 = vadd.f32 0.0, %v485
      %v487 = vpop.f32.mrb[0].mxu0
      %v488 = vadd.f32 0.0, %v487
      %v489 = vpop.f32.mrb[0].mxu0
      %v490 = vadd.f32 0.0, %v489
      %491 = vmatprep.mubr.bf16.mxu0 0
      %492 = vmatmul.mubr.bf16.gmra.mrb[0].mxu0 %v324
      %v493 = vpop.f32.mrb[0].mxu0
      %v494 = vadd.f32 0.0, %v493
      %v495 = vpop.f32.mrb[0].mxu0
      %v496 = vadd.f32 0.0, %v495
      %v497 = vpop.f32.mrb[0].mxu0
      %v498 = vadd.f32 0.0, %v497
      %v499 = vpop.f32.mrb[0].mxu0
      %v500 = vadd.f32 0.0, %v499
      %501 = vmatprep.mubr.bf16.mxu0 0
      %502 = vmatmul.mubr.bf16.gmra.mrb[0].mxu0 %v327
      %v503 = vpop.f32.mrb[0].mxu0
      %v504 = vadd.f32 0.0, %v503
      %v505 = vpop.f32.mrb[0].mxu0
      %v506 = vadd.f32 0.0, %v505
      %v507 = vpop.f32.mrb[0].mxu0
      %v508 = vadd.f32 0.0, %v507
      %v509 = vpop.f32.mrb[0].mxu0
      %v510 = vadd.f32 0.0, %v509
      %511 = vmatprep.mubr.bf16.mxu0 0
      %512 = vmatmul.mubr.bf16.gmra.mrb[0].mxu0 %v330
      %v513 = vpop.f32.mrb[0].mxu0
      %v514 = vadd.f32 0.0, %v513
      %v515 = vpop.f32.mrb[0].mxu0
      %v516 = vadd.f32 0.0, %v515
      %v517 = vpop.f32.mrb[0].mxu0
      %v518 = vadd.f32 0.0, %v517
      %v519 = vpop.f32.mrb[0].mxu0
      %v520 = vadd.f32 0.0, %v519
      %521 = vmatprep.mubr.bf16.mxu0 0
      %522 = vmatmul.mubr.bf16.gmra.mrb[0].mxu0 %v333
      %v523 = vpop.f32.mrb[0].mxu0
      %v524 = vadd.f32 0.0, %v523
      %v525 = vpop.f32.mrb[0].mxu0
      %v526 = vadd.f32 0.0, %v525
      %v527 = vpop.f32.mrb[0].mxu0
      %v528 = vadd.f32 0.0, %v527
      %v529 = vpop.f32.mrb[0].mxu0
      %v530 = vadd.f32 0.0, %v529
      %531 = vmatprep.mubr.bf16.mxu0 0
      %532 = vmatmul.mubr.bf16.gmra.mrb[0].mxu0 %v336
      %v533 = vpop.f32.mrb[0].mxu0
      %v534 = vadd.f32 0.0, %v533
      %v535 = vpop.f32.mrb[0].mxu0
      %v536 = vadd.f32 0.0, %v535
      %v537 = vpop.f32.mrb[0].mxu0
      %v538 = vadd.f32 0.0, %v537
      %v539 = vpop.f32.mrb[0].mxu0
      %v540 = vadd.f32 0.0, %v539
      %541 = vmatprep.mubr.bf16.mxu0 0
      %542 = vmatmul.mubr.bf16.gmra.mrb[0].mxu0 %v339
      %v543 = vpop.f32.mrb[0].mxu0
      %v544 = vadd.f32 0.0, %v543
      %v545 = vpop.f32.mrb[0].mxu0
      %v546 = vadd.f32 0.0, %v545
      %v547 = vpop.f32.mrb[0].mxu0
      %v548 = vadd.f32 0.0, %v547
      %v549 = vpop.f32.mrb[0].mxu0
      %v550 = vadd.f32 0.0, %v549
      %551 = vmatprep.mubr.bf16.mxu0 0
      %552 = vmatmul.mubr.bf16.gmra.mrb[0].mxu0 %v342
      %v553 = vpop.f32.mrb[0].mxu0
      %v554 = vadd.f32 0.0, %v553
      %v555 = vpop.f32.mrb[0].mxu0
      %v556 = vadd.f32 0.0, %v555
      %v557 = vpop.f32.mrb[0].mxu0
      %v558 = vadd.f32 0.0, %v557
      %v559 = vpop.f32.mrb[0].mxu0
      %v560 = vadd.f32 0.0, %v559
      %561 = vdwg.mxu0
      %562 = vmatprep.subr.bf16.mxu0 %v274
      %563 = vmatpush1.bf16.msra.mxu0 %v273
      %564 = vmatprep.subr.bf16.mxu0 %v355
      %565 = vmatpush1.bf16.msra.mxu0 %v352
      %566 = vmatprep.subr.bf16.mxu0 0
      %567 = vmatpush1.bf16.msra.mxu0 0
      %568 = vmatprep.subr.bf16.mxu0 0
      %569 = vmatpush1.bf16.msra.mxu0 0
      %570 = vmatprep.subr.bf16.mxu0 0
      %571 = vmatpush1.bf16.msra.mxu0 0
      %572 = vmatprep.subr.bf16.mxu0 0
      %573 = vmatpush1.bf16.msra.mxu0 0
      %574 = vmatprep.subr.bf16.mxu0 0
      %575 = vmatpush1.bf16.msra.mxu0 0
      %576 = vmatprep.subr.bf16.mxu0 0
      %577 = vmatpush1.bf16.msra.mxu0 0
      %578 = vmatprep.subr.bf16.mxu0 0
      %579 = vmatpush1.bf16.msra.mxu0 0
      %580 = vmatprep.subr.bf16.mxu0 0
      %581 = vmatpush1.bf16.msra.mxu0 0
      %582 = vmatprep.subr.bf16.mxu0 0
      %583 = vmatpush1.bf16.msra.mxu0 0
      %584 = vmatprep.subr.bf16.mxu0 0
      %585 = vmatpush1.bf16.msra.mxu0 0
      %586 = vmatprep.subr.bf16.mxu0 0
      %587 = vmatpush1.bf16.msra.mxu0 0
      %588 = vmatprep.subr.bf16.mxu0 0
      %589 = vmatpush1.bf16.msra.mxu0 0
      %590 = vmatprep.subr.bf16.mxu0 0
      %591 = vmatpush1.bf16.msra.mxu0 0
      %592 = vmatprep.subr.bf16.mxu0 0
      %593 = vmatpush1.bf16.msra.mxu0 0
      %594 = vmatprep.mubr.bf16.mxu0 0
      %595 = vmatmul.mubr.bf16.gmra.mrb[0].mxu0 %v297
      %v596 = vpop.f32.mrb[0].mxu0
      %v597 = vadd.f32 0.0, %v596
      %v598 = vpop.f32.mrb[0].mxu0
      %v599 = vadd.f32 0.0, %v598
      %v600 = vpop.f32.mrb[0].mxu0
      %v601 = vadd.f32 0.0, %v600
      %v602 = vpop.f32.mrb[0].mxu0
      %v603 = vadd.f32 0.0, %v602
      %604 = vmatprep.mubr.bf16.mxu0 0
      %605 = vmatmul.mubr.bf16.gmra.mrb[0].mxu0 %v300
      %v606 = vpop.f32.mrb[0].mxu0
      %v607 = vadd.f32 0.0, %v606
      %v608 = vpop.f32.mrb[0].mxu0
      %v609 = vadd.f32 0.0, %v608
      %v610 = vpop.f32.mrb[0].mxu0
      %v611 = vadd.f32 0.0, %v610
      %v612 = vpop.f32.mrb[0].mxu0
      %v613 = vadd.f32 0.0, %v612
      %614 = vmatprep.mubr.bf16.mxu0 0
      %615 = vmatmul.mubr.bf16.gmra.mrb[0].mxu0 %v303
      %v616 = vpop.f32.mrb[0].mxu0
      %v617 = vadd.f32 0.0, %v616
      %v618 = vpop.f32.mrb[0].mxu0
      %v619 = vadd.f32 0.0, %v618
      %v620 = vpop.f32.mrb[0].mxu0
      %v621 = vadd.f32 0.0, %v620
      %v622 = vpop.f32.mrb[0].mxu0
      %v623 = vadd.f32 0.0, %v622
      %624 = vmatprep.mubr.bf16.mxu0 0
      %625 = vmatmul.mubr.bf16.gmra.mrb[0].mxu0 %v306
      %v626 = vpop.f32.mrb[0].mxu0
      %v627 = vadd.f32 0.0, %v626
      %v628 = vpop.f32.mrb[0].mxu0
      %v629 = vadd.f32 0.0, %v628
      %v630 = vpop.f32.mrb[0].mxu0
      %v631 = vadd.f32 0.0, %v630
      %v632 = vpop.f32.mrb[0].mxu0
      %v633 = vadd.f32 0.0, %v632
      %634 = vmatprep.mubr.bf16.mxu0 0
      %635 = vmatmul.mubr.bf16.gmra.mrb[0].mxu0 %v309
      %v636 = vpop.f32.mrb[0].mxu0
      %v637 = vadd.f32 0.0, %v636
      %v638 = vpop.f32.mrb[0].mxu0
      %v639 = vadd.f32 0.0, %v638
      %v640 = vpop.f32.mrb[0].mxu0
      %v641 = vadd.f32 0.0, %v640
      %v642 = vpop.f32.mrb[0].mxu0
      %v643 = vadd.f32 0.0, %v642
      %644 = vmatprep.mubr.bf16.mxu0 0
      %645 = vmatmul.mubr.bf16.gmra.mrb[0].mxu0 %v312
      %v646 = vpop.f32.mrb[0].mxu0
      %v647 = vadd.f32 0.0, %v646
      %v648 = vpop.f32.mrb[0].mxu0
      %v649 = vadd.f32 0.0, %v648
      %v650 = vpop.f32.mrb[0].mxu0
      %v651 = vadd.f32 0.0, %v650
      %v652 = vpop.f32.mrb[0].mxu0
      %v653 = vadd.f32 0.0, %v652
      %654 = vmatprep.mubr.bf16.mxu0 0
      %655 = vmatmul.mubr.bf16.gmra.mrb[0].mxu0 %v315
      %v656 = vpop.f32.mrb[0].mxu0
      %v657 = vadd.f32 0.0, %v656
      %v658 = vpop.f32.mrb[0].mxu0
      %v659 = vadd.f32 0.0, %v658
      %v660 = vpop.f32.mrb[0].mxu0
      %v661 = vadd.f32 0.0, %v660
      %v662 = vpop.f32.mrb[0].mxu0
      %v663 = vadd.f32 0.0, %v662
      %664 = vmatprep.mubr.bf16.mxu0 0
      %665 = vmatmul.mubr.bf16.gmra.mrb[0].mxu0 %v318
      %v666 = vpop.f32.mrb[0].mxu0
      %v667 = vadd.f32 0.0, %v666
      %v668 = vpop.f32.mrb[0].mxu0
      %v669 = vadd.f32 0.0, %v668
      %v670 = vpop.f32.mrb[0].mxu0
      %v671 = vadd.f32 0.0, %v670
      %v672 = vpop.f32.mrb[0].mxu0
      %v673 = vadd.f32 0.0, %v672
      %674 = vmatprep.mubr.bf16.mxu0 0
      %675 = vmatmul.mubr.bf16.gmra.mrb[0].mxu0 %v321
      %v676 = vpop.f32.mrb[0].mxu0
      %v677 = vadd.f32 0.0, %v676
      %v678 = vpop.f32.mrb[0].mxu0
      %v679 = vadd.f32 0.0, %v678
      %v680 = vpop.f32.mrb[0].mxu0
      %v681 = vadd.f32 0.0, %v680
      %v682 = vpop.f32.mrb[0].mxu0
      %v683 = vadd.f32 0.0, %v682
      %684 = vmatprep.mubr.bf16.mxu0 0
      %685 = vmatmul.mubr.bf16.gmra.mrb[0].mxu0 %v324
      %v686 = vpop.f32.mrb[0].mxu0
      %v687 = vadd.f32 0.0, %v686
      %v688 = vpop.f32.mrb[0].mxu0
      %v689 = vadd.f32 0.0, %v688
      %v690 = vpop.f32.mrb[0].mxu0
      %v691 = vadd.f32 0.0, %v690
      %v692 = vpop.f32.mrb[0].mxu0
      %v693 = vadd.f32 0.0, %v692
      %694 = vmatprep.mubr.bf16.mxu0 0
      %695 = vmatmul.mubr.bf16.gmra.mrb[0].mxu0 %v327
      %v696 = vpop.f32.mrb[0].mxu0
      %v697 = vadd.f32 0.0, %v696
      %v698 = vpop.f32.mrb[0].mxu0
      %v699 = vadd.f32 0.0, %v698
      %v700 = vpop.f32.mrb[0].mxu0
      %v701 = vadd.f32 0.0, %v700
      %v702 = vpop.f32.mrb[0].mxu0
      %v703 = vadd.f32 0.0, %v702
      %704 = vmatprep.mubr.bf16.mxu0 0
      %705 = vmatmul.mubr.bf16.gmra.mrb[0].mxu0 %v330
      %v706 = vpop.f32.mrb[0].mxu0
      %v707 = vadd.f32 0.0, %v706
      %v708 = vpop.f32.mrb[0].mxu0
      %v709 = vadd.f32 0.0, %v708
      %v710 = vpop.f32.mrb[0].mxu0
      %v711 = vadd.f32 0.0, %v710
      %v712 = vpop.f32.mrb[0].mxu0
      %v713 = vadd.f32 0.0, %v712
      %714 = vmatprep.mubr.bf16.mxu0 0
      %715 = vmatmul.mubr.bf16.gmra.mrb[0].mxu0 %v333
      %v716 = vpop.f32.mrb[0].mxu0
      %v717 = vadd.f32 0.0, %v716
      %v718 = vpop.f32.mrb[0].mxu0
      %v719 = vadd.f32 0.0, %v718
      %v720 = vpop.f32.mrb[0].mxu0
      %v721 = vadd.f32 0.0, %v720
      %v722 = vpop.f32.mrb[0].mxu0
      %v723 = vadd.f32 0.0, %v722
      %724 = vmatprep.mubr.bf16.mxu0 0
      %725 = vmatmul.mubr.bf16.gmra.mrb[0].mxu0 %v336
      %v726 = vpop.f32.mrb[0].mxu0
      %v727 = vadd.f32 0.0, %v726
      %v728 = vpop.f32.mrb[0].mxu0
      %v729 = vadd.f32 0.0, %v728
      %v730 = vpop.f32.mrb[0].mxu0
      %v731 = vadd.f32 0.0, %v730
      %v732 = vpop.f32.mrb[0].mxu0
      %v733 = vadd.f32 0.0, %v732
      %734 = vmatprep.mubr.bf16.mxu0 0
      %735 = vmatmul.mubr.bf16.gmra.mrb[0].mxu0 %v339
      %v736 = vpop.f32.mrb[0].mxu0
      %v737 = vadd.f32 0.0, %v736
      %v738 = vpop.f32.mrb[0].mxu0
      %v739 = vadd.f32 0.0, %v738
      %v740 = vpop.f32.mrb[0].mxu0
      %v741 = vadd.f32 0.0, %v740
      %v742 = vpop.f32.mrb[0].mxu0
      %v743 = vadd.f32 0.0, %v742
      %744 = vmatprep.mubr.bf16.mxu0 0
      %745 = vmatmul.mubr.bf16.gmra.mrb[0].mxu0 %v342
      %v746 = vpop.f32.mrb[0].mxu0
      %v747 = vadd.f32 0.0, %v746
      %v748 = vpop.f32.mrb[0].mxu0
      %v749 = vadd.f32 0.0, %v748
      %v750 = vpop.f32.mrb[0].mxu0
      %v751 = vadd.f32 0.0, %v750
      %v752 = vpop.f32.mrb[0].mxu0
      %v753 = vadd.f32 0.0, %v752
      %754 = vdwg.mxu0
      %755 = vmatprep.subr.bf16.mxu0 %v276
      %756 = vmatpush1.bf16.msra.mxu0 %v275
      %757 = vmatprep.subr.bf16.mxu0 %v361
      %758 = vmatpush1.bf16.msra.mxu0 %v358
      %759 = vmatprep.subr.bf16.mxu0 0
      %760 = vmatpush1.bf16.msra.mxu0 0
      %761 = vmatprep.subr.bf16.mxu0 0
      %762 = vmatpush1.bf16.msra.mxu0 0
      %763 = vmatprep.subr.bf16.mxu0 0
      %764 = vmatpush1.bf16.msra.mxu0 0
      %765 = vmatprep.subr.bf16.mxu0 0
      %766 = vmatpush1.bf16.msra.mxu0 0
      %767 = vmatprep.subr.bf16.mxu0 0
      %768 = vmatpush1.bf16.msra.mxu0 0
      %769 = vmatprep.subr.bf16.mxu0 0
      %770 = vmatpush1.bf16.msra.mxu0 0
      %771 = vmatprep.subr.bf16.mxu0 0
      %772 = vmatpush1.bf16.msra.mxu0 0
      %773 = vmatprep.subr.bf16.mxu0 0
      %774 = vmatpush1.bf16.msra.mxu0 0
      %775 = vmatprep.subr.bf16.mxu0 0
      %776 = vmatpush1.bf16.msra.mxu0 0
      %777 = vmatprep.subr.bf16.mxu0 0
      %778 = vmatpush1.bf16.msra.mxu0 0
      %779 = vmatprep.subr.bf16.mxu0 0
      %780 = vmatpush1.bf16.msra.mxu0 0
      %781 = vmatprep.subr.bf16.mxu0 0
      %782 = vmatpush1.bf16.msra.mxu0 0
      %783 = vmatprep.subr.bf16.mxu0 0
      %784 = vmatpush1.bf16.msra.mxu0 0
      %785 = vmatprep.subr.bf16.mxu0 0
      %786 = vmatpush1.bf16.msra.mxu0 0
      %787 = vmatprep.mubr.bf16.mxu0 0
      %788 = vmatmul.mubr.bf16.gmra.mrb[0].mxu0 %v297
      %v789 = vpop.f32.mrb[0].mxu0
      %v790 = vadd.f32 0.0, %v789
      %v791 = vpop.f32.mrb[0].mxu0
      %v792 = vadd.f32 0.0, %v791
      %v793 = vpop.f32.mrb[0].mxu0
      %v794 = vadd.f32 0.0, %v793
      %v795 = vpop.f32.mrb[0].mxu0
      %v796 = vadd.f32 0.0, %v795
      %797 = vmatprep.mubr.bf16.mxu0 0
      %798 = vmatmul.mubr.bf16.gmra.mrb[0].mxu0 %v300
      %v799 = vpop.f32.mrb[0].mxu0
      %v800 = vadd.f32 0.0, %v799
      %v801 = vpop.f32.mrb[0].mxu0
      %v802 = vadd.f32 0.0, %v801
      %v803 = vpop.f32.mrb[0].mxu0
      %v804 = vadd.f32 0.0, %v803
      %v805 = vpop.f32.mrb[0].mxu0
      %v806 = vadd.f32 0.0, %v805
      %807 = vmatprep.mubr.bf16.mxu0 0
      %808 = vmatmul.mubr.bf16.gmra.mrb[0].mxu0 %v303
      %v809 = vpop.f32.mrb[0].mxu0
      %v810 = vadd.f32 0.0, %v809
      %v811 = vpop.f32.mrb[0].mxu0
      %v812 = vadd.f32 0.0, %v811
      %v813 = vpop.f32.mrb[0].mxu0
      %v814 = vadd.f32 0.0, %v813
      %v815 = vpop.f32.mrb[0].mxu0
      %v816 = vadd.f32 0.0, %v815
      %817 = vmatprep.mubr.bf16.mxu0 0
      %818 = vmatmul.mubr.bf16.gmra.mrb[0].mxu0 %v306
      %v819 = vpop.f32.mrb[0].mxu0
      %v820 = vadd.f32 0.0, %v819
      %v821 = vpop.f32.mrb[0].mxu0
      %v822 = vadd.f32 0.0, %v821
      %v823 = vpop.f32.mrb[0].mxu0
      %v824 = vadd.f32 0.0, %v823
      %v825 = vpop.f32.mrb[0].mxu0
      %v826 = vadd.f32 0.0, %v825
      %827 = vmatprep.mubr.bf16.mxu0 0
      %828 = vmatmul.mubr.bf16.gmra.mrb[0].mxu0 %v309
      %v829 = vpop.f32.mrb[0].mxu0
      %v830 = vadd.f32 0.0, %v829
      %v831 = vpop.f32.mrb[0].mxu0
      %v832 = vadd.f32 0.0, %v831
      %v833 = vpop.f32.mrb[0].mxu0
      %v834 = vadd.f32 0.0, %v833
      %v835 = vpop.f32.mrb[0].mxu0
      %v836 = vadd.f32 0.0, %v835
      %837 = vmatprep.mubr.bf16.mxu0 0
      %838 = vmatmul.mubr.bf16.gmra.mrb[0].mxu0 %v312
      %v839 = vpop.f32.mrb[0].mxu0
      %v840 = vadd.f32 0.0, %v839
      %v841 = vpop.f32.mrb[0].mxu0
      %v842 = vadd.f32 0.0, %v841
      %v843 = vpop.f32.mrb[0].mxu0
      %v844 = vadd.f32 0.0, %v843
      %v845 = vpop.f32.mrb[0].mxu0
      %v846 = vadd.f32 0.0, %v845
      %847 = vmatprep.mubr.bf16.mxu0 0
      %848 = vmatmul.mubr.bf16.gmra.mrb[0].mxu0 %v315
      %v849 = vpop.f32.mrb[0].mxu0
      %v850 = vadd.f32 0.0, %v849
      %v851 = vpop.f32.mrb[0].mxu0
      %v852 = vadd.f32 0.0, %v851
      %v853 = vpop.f32.mrb[0].mxu0
      %v854 = vadd.f32 0.0, %v853
      %v855 = vpop.f32.mrb[0].mxu0
      %v856 = vadd.f32 0.0, %v855
      %857 = vmatprep.mubr.bf16.mxu0 0
      %858 = vmatmul.mubr.bf16.gmra.mrb[0].mxu0 %v318
      %v859 = vpop.f32.mrb[0].mxu0
      %v860 = vadd.f32 0.0, %v859
      %v861 = vpop.f32.mrb[0].mxu0
      %v862 = vadd.f32 0.0, %v861
      %v863 = vpop.f32.mrb[0].mxu0
      %v864 = vadd.f32 0.0, %v863
      %v865 = vpop.f32.mrb[0].mxu0
      %v866 = vadd.f32 0.0, %v865
      %867 = vmatprep.mubr.bf16.mxu0 0
      %868 = vmatmul.mubr.bf16.gmra.mrb[0].mxu0 %v321
      %v869 = vpop.f32.mrb[0].mxu0
      %v870 = vadd.f32 0.0, %v869
      %v871 = vpop.f32.mrb[0].mxu0
      %v872 = vadd.f32 0.0, %v871
      %v873 = vpop.f32.mrb[0].mxu0
      %v874 = vadd.f32 0.0, %v873
      %v875 = vpop.f32.mrb[0].mxu0
      %v876 = vadd.f32 0.0, %v875
      %877 = vmatprep.mubr.bf16.mxu0 0
      %878 = vmatmul.mubr.bf16.gmra.mrb[0].mxu0 %v324
      %v879 = vpop.f32.mrb[0].mxu0
      %v880 = vadd.f32 0.0, %v879
      %v881 = vpop.f32.mrb[0].mxu0
      %v882 = vadd.f32 0.0, %v881
      %v883 = vpop.f32.mrb[0].mxu0
      %v884 = vadd.f32 0.0, %v883
      %v885 = vpop.f32.mrb[0].mxu0
      %v886 = vadd.f32 0.0, %v885
      %887 = vmatprep.mubr.bf16.mxu0 0
      %888 = vmatmul.mubr.bf16.gmra.mrb[0].mxu0 %v327
      %v889 = vpop.f32.mrb[0].mxu0
      %v890 = vadd.f32 0.0, %v889
      %v891 = vpop.f32.mrb[0].mxu0
      %v892 = vadd.f32 0.0, %v891
      %v893 = vpop.f32.mrb[0].mxu0
      %v894 = vadd.f32 0.0, %v893
      %v895 = vpop.f32.mrb[0].mxu0
      %v896 = vadd.f32 0.0, %v895
      %897 = vmatprep.mubr.bf16.mxu0 0
      %898 = vmatmul.mubr.bf16.gmra.mrb[0].mxu0 %v330
      %v899 = vpop.f32.mrb[0].mxu0
      %v900 = vadd.f32 0.0, %v899
      %v901 = vpop.f32.mrb[0].mxu0
      %v902 = vadd.f32 0.0, %v901
      %v903 = vpop.f32.mrb[0].mxu0
      %v904 = vadd.f32 0.0, %v903
      %v905 = vpop.f32.mrb[0].mxu0
      %v906 = vadd.f32 0.0, %v905
      %907 = vmatprep.mubr.bf16.mxu0 0
      %908 = vmatmul.mubr.bf16.gmra.mrb[0].mxu0 %v333
      %v909 = vpop.f32.mrb[0].mxu0
      %v910 = vadd.f32 0.0, %v909
      %v911 = vpop.f32.mrb[0].mxu0
      %v912 = vadd.f32 0.0, %v911
      %v913 = vpop.f32.mrb[0].mxu0
      %v914 = vadd.f32 0.0, %v913
      %v915 = vpop.f32.mrb[0].mxu0
      %v916 = vadd.f32 0.0, %v915
      %917 = vmatprep.mubr.bf16.mxu0 0
      %918 = vmatmul.mubr.bf16.gmra.mrb[0].mxu0 %v336
      %v919 = vpop.f32.mrb[0].mxu0
      %v920 = vadd.f32 0.0, %v919
      %v921 = vpop.f32.mrb[0].mxu0
      %v922 = vadd.f32 0.0, %v921
      %v923 = vpop.f32.mrb[0].mxu0
      %v924 = vadd.f32 0.0, %v923
      %v925 = vpop.f32.mrb[0].mxu0
      %v926 = vadd.f32 0.0, %v925
      %927 = vmatprep.mubr.bf16.mxu0 0
      %928 = vmatmul.mubr.bf16.gmra.mrb[0].mxu0 %v339
      %v929 = vpop.f32.mrb[0].mxu0
      %v930 = vadd.f32 0.0, %v929
      %v931 = vpop.f32.mrb[0].mxu0
      %v932 = vadd.f32 0.0, %v931
      %v933 = vpop.f32.mrb[0].mxu0
      %v934 = vadd.f32 0.0, %v933
      %v935 = vpop.f32.mrb[0].mxu0
      %v936 = vadd.f32 0.0, %v935
      %937 = vmatprep.mubr.bf16.mxu0 0
      %938 = vmatmul.mubr.bf16.gmra.mrb[0].mxu0 %v342
      %v939 = vpop.f32.mrb[0].mxu0
      %v940 = vadd.f32 0.0, %v939
      %v941 = vpop.f32.mrb[0].mxu0
      %v942 = vadd.f32 0.0, %v941
      %v943 = vpop.f32.mrb[0].mxu0
      %v944 = vadd.f32 0.0, %v943
      %v945 = vpop.f32.mrb[0].mxu0
      %v946 = vadd.f32 0.0, %v945
      %947 = vdwg.mxu0
      %948 = vmatprep.subr.bf16.mxu0 %v278
      %949 = vmatpush1.bf16.msra.mxu0 %v277
      %950 = vmatprep.subr.bf16.mxu0 %v367
      %951 = vmatpush1.bf16.msra.mxu0 %v364
      %952 = vmatprep.subr.bf16.mxu0 0
      %953 = vmatpush1.bf16.msra.mxu0 0
      %954 = vmatprep.subr.bf16.mxu0 0
      %955 = vmatpush1.bf16.msra.mxu0 0
      %956 = vmatprep.subr.bf16.mxu0 0
      %957 = vmatpush1.bf16.msra.mxu0 0
      %958 = vmatprep.subr.bf16.mxu0 0
      %959 = vmatpush1.bf16.msra.mxu0 0
      %960 = vmatprep.subr.bf16.mxu0 0
      %961 = vmatpush1.bf16.msra.mxu0 0
      %962 = vmatprep.subr.bf16.mxu0 0
      %963 = vmatpush1.bf16.msra.mxu0 0
      %964 = vmatprep.subr.bf16.mxu0 0
      %965 = vmatpush1.bf16.msra.mxu0 0
      %966 = vmatprep.subr.bf16.mxu0 0
      %967 = vmatpush1.bf16.msra.mxu0 0
      %968 = vmatprep.subr.bf16.mxu0 0
      %969 = vmatpush1.bf16.msra.mxu0 0
      %970 = vmatprep.subr.bf16.mxu0 0
      %971 = vmatpush1.bf16.msra.mxu0 0
      %972 = vmatprep.subr.bf16.mxu0 0
      %973 = vmatpush1.bf16.msra.mxu0 0
      %974 = vmatprep.subr.bf16.mxu0 0
      %975 = vmatpush1.bf16.msra.mxu0 0
      %976 = vmatprep.subr.bf16.mxu0 0
      %977 = vmatpush1.bf16.msra.mxu0 0
      %978 = vmatprep.subr.bf16.mxu0 0
      %979 = vmatpush1.bf16.msra.mxu0 0
      %980 = vmatprep.mubr.bf16.mxu0 0
      %981 = vmatmul.mubr.bf16.gmra.mrb[0].mxu0 %v297
      %v982 = vpop.f32.mrb[0].mxu0
      %v983 = vadd.f32 0.0, %v982
      %v984 = vpop.f32.mrb[0].mxu0
      %v985 = vadd.f32 0.0, %v984
      %v986 = vpop.f32.mrb[0].mxu0
      %v987 = vadd.f32 0.0, %v986
      %v988 = vpop.f32.mrb[0].mxu0
      %v989 = vadd.f32 0.0, %v988
      %990 = vmatprep.mubr.bf16.mxu0 0
      %991 = vmatmul.mubr.bf16.gmra.mrb[0].mxu0 %v300
      %v992 = vpop.f32.mrb[0].mxu0
      %v993 = vadd.f32 0.0, %v992
      %v994 = vpop.f32.mrb[0].mxu0
      %v995 = vadd.f32 0.0, %v994
      %v996 = vpop.f32.mrb[0].mxu0
      %v997 = vadd.f32 0.0, %v996
      %v998 = vpop.f32.mrb[0].mxu0
      %v999 = vadd.f32 0.0, %v998
      %1000 = vmatprep.mubr.bf16.mxu0 0
      %1001 = vmatmul.mubr.bf16.gmra.mrb[0].mxu0 %v303
      %v1002 = vpop.f32.mrb[0].mxu0
      %v1003 = vadd.f32 0.0, %v1002
      %v1004 = vpop.f32.mrb[0].mxu0
      %v1005 = vadd.f32 0.0, %v1004
      %v1006 = vpop.f32.mrb[0].mxu0
      %v1007 = vadd.f32 0.0, %v1006
      %v1008 = vpop.f32.mrb[0].mxu0
      %v1009 = vadd.f32 0.0, %v1008
      %1010 = vmatprep.mubr.bf16.mxu0 0
      %1011 = vmatmul.mubr.bf16.gmra.mrb[0].mxu0 %v306
      %v1012 = vpop.f32.mrb[0].mxu0
      %v1013 = vadd.f32 0.0, %v1012
      %v1014 = vpop.f32.mrb[0].mxu0
      %v1015 = vadd.f32 0.0, %v1014
      %v1016 = vpop.f32.mrb[0].mxu0
      %v1017 = vadd.f32 0.0, %v1016
      %v1018 = vpop.f32.mrb[0].mxu0
      %v1019 = vadd.f32 0.0, %v1018
      %1020 = vmatprep.mubr.bf16.mxu0 0
      %1021 = vmatmul.mubr.bf16.gmra.mrb[0].mxu0 %v309
      %v1022 = vpop.f32.mrb[0].mxu0
      %v1023 = vadd.f32 0.0, %v1022
      %v1024 = vpop.f32.mrb[0].mxu0
      %v1025 = vadd.f32 0.0, %v1024
      %v1026 = vpop.f32.mrb[0].mxu0
      %v1027 = vadd.f32 0.0, %v1026
      %v1028 = vpop.f32.mrb[0].mxu0
      %v1029 = vadd.f32 0.0, %v1028
      %1030 = vmatprep.mubr.bf16.mxu0 0
      %1031 = vmatmul.mubr.bf16.gmra.mrb[0].mxu0 %v312
      %v1032 = vpop.f32.mrb[0].mxu0
      %v1033 = vadd.f32 0.0, %v1032
      %v1034 = vpop.f32.mrb[0].mxu0
      %v1035 = vadd.f32 0.0, %v1034
      %v1036 = vpop.f32.mrb[0].mxu0
      %v1037 = vadd.f32 0.0, %v1036
      %v1038 = vpop.f32.mrb[0].mxu0
      %v1039 = vadd.f32 0.0, %v1038
      %1040 = vmatprep.mubr.bf16.mxu0 0
      %1041 = vmatmul.mubr.bf16.gmra.mrb[0].mxu0 %v315
      %v1042 = vpop.f32.mrb[0].mxu0
      %v1043 = vadd.f32 0.0, %v1042
      %v1044 = vpop.f32.mrb[0].mxu0
      %v1045 = vadd.f32 0.0, %v1044
      %v1046 = vpop.f32.mrb[0].mxu0
      %v1047 = vadd.f32 0.0, %v1046
      %v1048 = vpop.f32.mrb[0].mxu0
      %v1049 = vadd.f32 0.0, %v1048
      %1050 = vmatprep.mubr.bf16.mxu0 0
      %1051 = vmatmul.mubr.bf16.gmra.mrb[0].mxu0 %v318
      %v1052 = vpop.f32.mrb[0].mxu0
      %v1053 = vadd.f32 0.0, %v1052
      %v1054 = vpop.f32.mrb[0].mxu0
      %v1055 = vadd.f32 0.0, %v1054
      %v1056 = vpop.f32.mrb[0].mxu0
      %v1057 = vadd.f32 0.0, %v1056
      %v1058 = vpop.f32.mrb[0].mxu0
      %v1059 = vadd.f32 0.0, %v1058
      %1060 = vmatprep.mubr.bf16.mxu0 0
      %1061 = vmatmul.mubr.bf16.gmra.mrb[0].mxu0 %v321
      %v1062 = vpop.f32.mrb[0].mxu0
      %v1063 = vadd.f32 0.0, %v1062
      %v1064 = vpop.f32.mrb[0].mxu0
      %v1065 = vadd.f32 0.0, %v1064
      %v1066 = vpop.f32.mrb[0].mxu0
      %v1067 = vadd.f32 0.0, %v1066
      %v1068 = vpop.f32.mrb[0].mxu0
      %v1069 = vadd.f32 0.0, %v1068
      %1070 = vmatprep.mubr.bf16.mxu0 0
      %1071 = vmatmul.mubr.bf16.gmra.mrb[0].mxu0 %v324
      %v1072 = vpop.f32.mrb[0].mxu0
      %v1073 = vadd.f32 0.0, %v1072
      %v1074 = vpop.f32.mrb[0].mxu0
      %v1075 = vadd.f32 0.0, %v1074
      %v1076 = vpop.f32.mrb[0].mxu0
      %v1077 = vadd.f32 0.0, %v1076
      %v1078 = vpop.f32.mrb[0].mxu0
      %v1079 = vadd.f32 0.0, %v1078
      %1080 = vmatprep.mubr.bf16.mxu0 0
      %1081 = vmatmul.mubr.bf16.gmra.mrb[0].mxu0 %v327
      %v1082 = vpop.f32.mrb[0].mxu0
      %v1083 = vadd.f32 0.0, %v1082
      %v1084 = vpop.f32.mrb[0].mxu0
      %v1085 = vadd.f32 0.0, %v1084
      %v1086 = vpop.f32.mrb[0].mxu0
      %v1087 = vadd.f32 0.0, %v1086
      %v1088 = vpop.f32.mrb[0].mxu0
      %v1089 = vadd.f32 0.0, %v1088
      %1090 = vmatprep.mubr.bf16.mxu0 0
      %1091 = vmatmul.mubr.bf16.gmra.mrb[0].mxu0 %v330
      %v1092 = vpop.f32.mrb[0].mxu0
      %v1093 = vadd.f32 0.0, %v1092
      %v1094 = vpop.f32.mrb[0].mxu0
      %v1095 = vadd.f32 0.0, %v1094
      %v1096 = vpop.f32.mrb[0].mxu0
      %v1097 = vadd.f32 0.0, %v1096
      %v1098 = vpop.f32.mrb[0].mxu0
      %v1099 = vadd.f32 0.0, %v1098
      %1100 = vmatprep.mubr.bf16.mxu0 0
      %1101 = vmatmul.mubr.bf16.gmra.mrb[0].mxu0 %v333
      %v1102 = vpop.f32.mrb[0].mxu0
      %v1103 = vadd.f32 0.0, %v1102
      %v1104 = vpop.f32.mrb[0].mxu0
      %v1105 = vadd.f32 0.0, %v1104
      %v1106 = vpop.f32.mrb[0].mxu0
      %v1107 = vadd.f32 0.0, %v1106
      %v1108 = vpop.f32.mrb[0].mxu0
      %v1109 = vadd.f32 0.0, %v1108
      %1110 = vmatprep.mubr.bf16.mxu0 0
      %1111 = vmatmul.mubr.bf16.gmra.mrb[0].mxu0 %v336
      %v1112 = vpop.f32.mrb[0].mxu0
      %v1113 = vadd.f32 0.0, %v1112
      %v1114 = vpop.f32.mrb[0].mxu0
      %v1115 = vadd.f32 0.0, %v1114
      %v1116 = vpop.f32.mrb[0].mxu0
      %v1117 = vadd.f32 0.0, %v1116
      %v1118 = vpop.f32.mrb[0].mxu0
      %v1119 = vadd.f32 0.0, %v1118
      %1120 = vmatprep.mubr.bf16.mxu0 0
      %1121 = vmatmul.mubr.bf16.gmra.mrb[0].mxu0 %v339
      %v1122 = vpop.f32.mrb[0].mxu0
      %v1123 = vadd.f32 0.0, %v1122
      %v1124 = vpop.f32.mrb[0].mxu0
      %v1125 = vadd.f32 0.0, %v1124
      %v1126 = vpop.f32.mrb[0].mxu0
      %v1127 = vadd.f32 0.0, %v1126
      %v1128 = vpop.f32.mrb[0].mxu0
      %v1129 = vadd.f32 0.0, %v1128
      %1130 = vmatprep.mubr.bf16.mxu0 0
      %1131 = vmatmul.mubr.bf16.gmra.mrb[0].mxu0 %v342
      %v1132 = vpop.f32.mrb[0].mxu0
      %v1133 = vadd.f32 0.0, %v1132
      %v1134 = vpop.f32.mrb[0].mxu0
      %v1135 = vadd.f32 0.0, %v1134
      %v1136 = vpop.f32.mrb[0].mxu0
      %v1137 = vadd.f32 0.0, %v1136
      %v1138 = vpop.f32.mrb[0].mxu0
      %v1139 = vadd.f32 0.0, %v1138
      %1140 = vdwg.mxu0
      %v1141 = vmax.f32 %v404, 0.0
      %v1142 = vmax.f32 %v406, 0.0
      %v1143 = vmax.f32 %v597, 0.0
      %v1144 = vmax.f32 %v599, 0.0
      %v1145 = vmax.f32 %v408, 0.0
      %v1146 = vmax.f32 %v410, 0.0
      %v1147 = vmax.f32 %v601, 0.0
      %v1148 = vmax.f32 %v603, 0.0
      %v1149 = vmax.f32 %v414, 0.0
      %v1150 = vmax.f32 %v416, 0.0
      %v1151 = vmax.f32 %v607, 0.0
      %v1152 = vmax.f32 %v609, 0.0
      %v1153 = vmax.f32 %v418, 0.0
      %v1154 = vmax.f32 %v420, 0.0
      %v1155 = vmax.f32 %v611, 0.0
      %v1156 = vmax.f32 %v613, 0.0
      %v1157 = vmax.f32 %v424, 0.0
      %v1158 = vmax.f32 %v426, 0.0
      %v1159 = vmax.f32 %v617, 0.0
      %v1160 = vmax.f32 %v619, 0.0
      %v1161 = vmax.f32 %v428, 0.0
      %v1162 = vmax.f32 %v430, 0.0
      %v1163 = vmax.f32 %v621, 0.0
      %v1164 = vmax.f32 %v623, 0.0
      %v1165 = vmax.f32 %v434, 0.0
      %v1166 = vmax.f32 %v436, 0.0
      %v1167 = vmax.f32 %v627, 0.0
      %v1168 = vmax.f32 %v629, 0.0
      %v1169 = vmax.f32 %v438, 0.0
      %v1170 = vmax.f32 %v440, 0.0
      %v1171 = vmax.f32 %v631, 0.0
      %v1172 = vmax.f32 %v633, 0.0
      %v1173 = vmax.f32 %v444, 0.0
      %v1174 = vmax.f32 %v446, 0.0
      %v1175 = vmax.f32 %v637, 0.0
      %v1176 = vmax.f32 %v639, 0.0
      %v1177 = vmax.f32 %v448, 0.0
      %v1178 = vmax.f32 %v450, 0.0
      %v1179 = vmax.f32 %v641, 0.0
      %v1180 = vmax.f32 %v643, 0.0
      %v1181 = vmax.f32 %v454, 0.0
      %v1182 = vmax.f32 %v456, 0.0
      %v1183 = vmax.f32 %v647, 0.0
      %v1184 = vmax.f32 %v649, 0.0
      %v1185 = vmax.f32 %v458, 0.0
      %v1186 = vmax.f32 %v460, 0.0
      %v1187 = vmax.f32 %v651, 0.0
      %v1188 = vmax.f32 %v653, 0.0
      %v1189 = vmax.f32 %v464, 0.0
      %v1190 = vmax.f32 %v466, 0.0
      %v1191 = vmax.f32 %v657, 0.0
      %v1192 = vmax.f32 %v659, 0.0
      %v1193 = vmax.f32 %v468, 0.0
      %v1194 = vmax.f32 %v470, 0.0
      %v1195 = vmax.f32 %v661, 0.0
      %v1196 = vmax.f32 %v663, 0.0
      %v1197 = vmax.f32 %v474, 0.0
      %v1198 = vmax.f32 %v476, 0.0
      %v1199 = vmax.f32 %v667, 0.0
      %v1200 = vmax.f32 %v669, 0.0
      %v1201 = vmax.f32 %v478, 0.0
      %v1202 = vmax.f32 %v480, 0.0
      %v1203 = vmax.f32 %v671, 0.0
      %v1204 = vmax.f32 %v673, 0.0
      %v1205 = vmax.f32 %v484, 0.0
      %v1206 = vmax.f32 %v486, 0.0
      %v1207 = vmax.f32 %v677, 0.0
      %v1208 = vmax.f32 %v679, 0.0
      %v1209 = vmax.f32 %v488, 0.0
      %v1210 = vmax.f32 %v490, 0.0
      %v1211 = vmax.f32 %v681, 0.0
      %v1212 = vmax.f32 %v683, 0.0
      %v1213 = vmax.f32 %v494, 0.0
      %v1214 = vmax.f32 %v496, 0.0
      %v1215 = vmax.f32 %v687, 0.0
      %v1216 = vmax.f32 %v689, 0.0
      %v1217 = vmax.f32 %v498, 0.0
      %v1218 = vmax.f32 %v500, 0.0
      %v1219 = vmax.f32 %v691, 0.0
      %v1220 = vmax.f32 %v693, 0.0
      %v1221 = vmax.f32 %v504, 0.0
      %v1222 = vmax.f32 %v506, 0.0
      %v1223 = vmax.f32 %v697, 0.0
      %v1224 = vmax.f32 %v699, 0.0
      %v1225 = vmax.f32 %v508, 0.0
      %v1226 = vmax.f32 %v510, 0.0
      %v1227 = vmax.f32 %v701, 0.0
      %v1228 = vmax.f32 %v703, 0.0
      %v1229 = vmax.f32 %v514, 0.0
      %v1230 = vmax.f32 %v516, 0.0
      %v1231 = vmax.f32 %v707, 0.0
      %v1232 = vmax.f32 %v709, 0.0
      %v1233 = vmax.f32 %v518, 0.0
      %v1234 = vmax.f32 %v520, 0.0
      %v1235 = vmax.f32 %v711, 0.0
      %v1236 = vmax.f32 %v713, 0.0
      %v1237 = vmax.f32 %v524, 0.0
      %v1238 = vmax.f32 %v526, 0.0
      %v1239 = vmax.f32 %v717, 0.0
      %v1240 = vmax.f32 %v719, 0.0
      %v1241 = vmax.f32 %v528, 0.0
      %v1242 = vmax.f32 %v530, 0.0
      %v1243 = vmax.f32 %v721, 0.0
      %v1244 = vmax.f32 %v723, 0.0
      %v1245 = vmax.f32 %v534, 0.0
      %v1246 = vmax.f32 %v536, 0.0
      %v1247 = vmax.f32 %v727, 0.0
      %v1248 = vmax.f32 %v729, 0.0
      %v1249 = vmax.f32 %v538, 0.0
      %v1250 = vmax.f32 %v540, 0.0
      %v1251 = vmax.f32 %v731, 0.0
      %v1252 = vmax.f32 %v733, 0.0
      %v1253 = vmax.f32 %v544, 0.0
      %v1254 = vmax.f32 %v546, 0.0
      %v1255 = vmax.f32 %v737, 0.0
      %v1256 = vmax.f32 %v739, 0.0
      %v1257 = vmax.f32 %v548, 0.0
      %v1258 = vmax.f32 %v550, 0.0
      %v1259 = vmax.f32 %v741, 0.0
      %v1260 = vmax.f32 %v743, 0.0
      %v1261 = vmax.f32 %v554, 0.0
      %v1262 = vmax.f32 %v556, 0.0
      %v1263 = vmax.f32 %v747, 0.0
      %v1264 = vmax.f32 %v749, 0.0
      %v1265 = vmax.f32 %v558, 0.0
      %v1266 = vmax.f32 %v560, 0.0
      %v1267 = vmax.f32 %v751, 0.0
      %v1268 = vmax.f32 %v753, 0.0
      %v1269 = vmul.f32 %v1141, %v790
      %v1270 = vmul.f32 %v1142, %v792
      %v1271 = vmul.f32 %v1143, %v983
      %v1272 = vmul.f32 %v1144, %v985
      %v1273 = vmul.f32 %v1145, %v794
      %v1274 = vmul.f32 %v1146, %v796
      %v1275 = vmul.f32 %v1147, %v987
      %v1276 = vmul.f32 %v1148, %v989
      %v1277 = vmul.f32 %v1149, %v800
      %v1278 = vmul.f32 %v1150, %v802
      %v1279 = vmul.f32 %v1151, %v993
      %v1280 = vmul.f32 %v1152, %v995
      %v1281 = vmul.f32 %v1153, %v804
      %v1282 = vmul.f32 %v1154, %v806
      %v1283 = vmul.f32 %v1155, %v997
      %v1284 = vmul.f32 %v1156, %v999
      %v1285 = vmul.f32 %v1157, %v810
      %v1286 = vmul.f32 %v1158, %v812
      %v1287 = vmul.f32 %v1159, %v1003
      %v1288 = vmul.f32 %v1160, %v1005
      %v1289 = vmul.f32 %v1161, %v814
      %v1290 = vmul.f32 %v1162, %v816
      %v1291 = vmul.f32 %v1163, %v1007
      %v1292 = vmul.f32 %v1164, %v1009
      %v1293 = vmul.f32 %v1165, %v820
      %v1294 = vmul.f32 %v1166, %v822
      %v1295 = vmul.f32 %v1167, %v1013
      %v1296 = vmul.f32 %v1168, %v1015
      %v1297 = vmul.f32 %v1169, %v824
      %v1298 = vmul.f32 %v1170, %v826
      %v1299 = vmul.f32 %v1171, %v1017
      %v1300 = vmul.f32 %v1172, %v1019
      %v1301 = vmul.f32 %v1173, %v830
      %v1302 = vmul.f32 %v1174, %v832
      %v1303 = vmul.f32 %v1175, %v1023
      %v1304 = vmul.f32 %v1176, %v1025
      %v1305 = vmul.f32 %v1177, %v834
      %v1306 = vmul.f32 %v1178, %v836
      %v1307 = vmul.f32 %v1179, %v1027
      %v1308 = vmul.f32 %v1180, %v1029
      %v1309 = vmul.f32 %v1181, %v840
      %v1310 = vmul.f32 %v1182, %v842
      %v1311 = vmul.f32 %v1183, %v1033
      %v1312 = vmul.f32 %v1184, %v1035
      %v1313 = vmul.f32 %v1185, %v844
      %v1314 = vmul.f32 %v1186, %v846
      %v1315 = vmul.f32 %v1187, %v1037
      %v1316 = vmul.f32 %v1188, %v1039
      %v1317 = vmul.f32 %v1189, %v850
      %v1318 = vmul.f32 %v1190, %v852
      %v1319 = vmul.f32 %v1191, %v1043
      %v1320 = vmul.f32 %v1192, %v1045
      %v1321 = vmul.f32 %v1193, %v854
      %v1322 = vmul.f32 %v1194, %v856
      %v1323 = vmul.f32 %v1195, %v1047
      %v1324 = vmul.f32 %v1196, %v1049
      %v1325 = vmul.f32 %v1197, %v860
      %v1326 = vmul.f32 %v1198, %v862
      %v1327 = vmul.f32 %v1199, %v1053
      %v1328 = vmul.f32 %v1200, %v1055
      %v1329 = vmul.f32 %v1201, %v864
      %v1330 = vmul.f32 %v1202, %v866
      %v1331 = vmul.f32 %v1203, %v1057
      %v1332 = vmul.f32 %v1204, %v1059
      %v1333 = vmul.f32 %v1205, %v870
      %v1334 = vmul.f32 %v1206, %v872
      %v1335 = vmul.f32 %v1207, %v1063
      %v1336 = vmul.f32 %v1208, %v1065
      %v1337 = vmul.f32 %v1209, %v874
      %v1338 = vmul.f32 %v1210, %v876
      %v1339 = vmul.f32 %v1211, %v1067
      %v1340 = vmul.f32 %v1212, %v1069
      %v1341 = vmul.f32 %v1213, %v880
      %v1342 = vmul.f32 %v1214, %v882
      %v1343 = vmul.f32 %v1215, %v1073
      %v1344 = vmul.f32 %v1216, %v1075
      %v1345 = vmul.f32 %v1217, %v884
      %v1346 = vmul.f32 %v1218, %v886
      %v1347 = vmul.f32 %v1219, %v1077
      %v1348 = vmul.f32 %v1220, %v1079
      %v1349 = vmul.f32 %v1221, %v890
      %v1350 = vmul.f32 %v1222, %v892
      %v1351 = vmul.f32 %v1223, %v1083
      %v1352 = vmul.f32 %v1224, %v1085
      %v1353 = vmul.f32 %v1225, %v894
      %v1354 = vmul.f32 %v1226, %v896
      %v1355 = vmul.f32 %v1227, %v1087
      %v1356 = vmul.f32 %v1228, %v1089
      %v1357 = vmul.f32 %v1229, %v900
      %v1358 = vmul.f32 %v1230, %v902
      %v1359 = vmul.f32 %v1231, %v1093
      %v1360 = vmul.f32 %v1232, %v1095
      %v1361 = vmul.f32 %v1233, %v904
      %v1362 = vmul.f32 %v1234, %v906
      %v1363 = vmul.f32 %v1235, %v1097
      %v1364 = vmul.f32 %v1236, %v1099
      %v1365 = vmul.f32 %v1237, %v910
      %v1366 = vmul.f32 %v1238, %v912
      %v1367 = vmul.f32 %v1239, %v1103
      %v1368 = vmul.f32 %v1240, %v1105
      %v1369 = vmul.f32 %v1241, %v914
      %v1370 = vmul.f32 %v1242, %v916
      %v1371 = vmul.f32 %v1243, %v1107
      %v1372 = vmul.f32 %v1244, %v1109
      %v1373 = vmul.f32 %v1245, %v920
      %v1374 = vmul.f32 %v1246, %v922
      %v1375 = vmul.f32 %v1247, %v1113
      %v1376 = vmul.f32 %v1248, %v1115
      %v1377 = vmul.f32 %v1249, %v924
      %v1378 = vmul.f32 %v1250, %v926
      %v1379 = vmul.f32 %v1251, %v1117
      %v1380 = vmul.f32 %v1252, %v1119
      %v1381 = vmul.f32 %v1253, %v930
      %v1382 = vmul.f32 %v1254, %v932
      %v1383 = vmul.f32 %v1255, %v1123
      %v1384 = vmul.f32 %v1256, %v1125
      %v1385 = vmul.f32 %v1257, %v934
      %v1386 = vmul.f32 %v1258, %v936
      %v1387 = vmul.f32 %v1259, %v1127
      %v1388 = vmul.f32 %v1260, %v1129
      %v1389 = vmul.f32 %v1261, %v940
      %v1390 = vmul.f32 %v1262, %v942
      %v1391 = vmul.f32 %v1263, %v1133
      %v1392 = vmul.f32 %v1264, %v1135
      %v1393 = vmul.f32 %v1265, %v944
      %v1394 = vmul.f32 %v1266, %v946
      %v1395 = vmul.f32 %v1267, %v1137
      %v1396 = vmul.f32 %v1268, %v1139
      %v1397 = vpack.c.bf16 %v1273, %v1269
      %v1398 = vpack.c.bf16 %v1274, %v1270
      %v1399 = vpack.c.bf16 %v1275, %v1271
      %v1400 = vpack.c.bf16 %v1276, %v1272
      %v1401 = vpack.c.bf16 %v1281, %v1277
      %v1402 = vpack.c.bf16 %v1282, %v1278
      %v1403 = vpack.c.bf16 %v1283, %v1279
      %v1404 = vpack.c.bf16 %v1284, %v1280
      %v1405 = vpack.c.bf16 %v1289, %v1285
      %v1406 = vpack.c.bf16 %v1290, %v1286
      %v1407 = vpack.c.bf16 %v1291, %v1287
      %v1408 = vpack.c.bf16 %v1292, %v1288
      %v1409 = vpack.c.bf16 %v1297, %v1293
      %v1410 = vpack.c.bf16 %v1298, %v1294
      %v1411 = vpack.c.bf16 %v1299, %v1295
      %v1412 = vpack.c.bf16 %v1300, %v1296
      %v1413 = vpack.c.bf16 %v1305, %v1301
      %v1414 = vpack.c.bf16 %v1306, %v1302
      %v1415 = vpack.c.bf16 %v1307, %v1303
      %v1416 = vpack.c.bf16 %v1308, %v1304
      %v1417 = vpack.c.bf16 %v1313, %v1309
      %v1418 = vpack.c.bf16 %v1314, %v1310
      %v1419 = vpack.c.bf16 %v1315, %v1311
      %v1420 = vpack.c.bf16 %v1316, %v1312
      %v1421 = vpack.c.bf16 %v1321, %v1317
      %v1422 = vpack.c.bf16 %v1322, %v1318
      %v1423 = vpack.c.bf16 %v1323, %v1319
      %v1424 = vpack.c.bf16 %v1324, %v1320
      %v1425 = vpack.c.bf16 %v1329, %v1325
      %v1426 = vpack.c.bf16 %v1330, %v1326
      %v1427 = vpack.c.bf16 %v1331, %v1327
      %v1428 = vpack.c.bf16 %v1332, %v1328
      %v1429 = vpack.c.bf16 %v1337, %v1333
      %v1430 = vpack.c.bf16 %v1338, %v1334
      %v1431 = vpack.c.bf16 %v1339, %v1335
      %v1432 = vpack.c.bf16 %v1340, %v1336
      %v1433 = vpack.c.bf16 %v1345, %v1341
      %v1434 = vpack.c.bf16 %v1346, %v1342
      %v1435 = vpack.c.bf16 %v1347, %v1343
      %v1436 = vpack.c.bf16 %v1348, %v1344
      %v1437 = vpack.c.bf16 %v1353, %v1349
      %v1438 = vpack.c.bf16 %v1354, %v1350
      %v1439 = vpack.c.bf16 %v1355, %v1351
      %v1440 = vpack.c.bf16 %v1356, %v1352
      %v1441 = vpack.c.bf16 %v1361, %v1357
      %v1442 = vpack.c.bf16 %v1362, %v1358
      %v1443 = vpack.c.bf16 %v1363, %v1359
      %v1444 = vpack.c.bf16 %v1364, %v1360
      %v1445 = vpack.c.bf16 %v1369, %v1365
      %v1446 = vpack.c.bf16 %v1370, %v1366
      %v1447 = vpack.c.bf16 %v1371, %v1367
      %v1448 = vpack.c.bf16 %v1372, %v1368
      %v1449 = vpack.c.bf16 %v1377, %v1373
      %v1450 = vpack.c.bf16 %v1378, %v1374
      %v1451 = vpack.c.bf16 %v1379, %v1375
      %v1452 = vpack.c.bf16 %v1380, %v1376
      %v1453 = vpack.c.bf16 %v1385, %v1381
      %v1454 = vpack.c.bf16 %v1386, %v1382
      %v1455 = vpack.c.bf16 %v1387, %v1383
      %v1456 = vpack.c.bf16 %v1388, %v1384
      %v1457 = vpack.c.bf16 %v1393, %v1389
      %v1458 = vpack.c.bf16 %v1394, %v1390
      %v1459 = vpack.c.bf16 %v1395, %v1391
      %v1460 = vpack.c.bf16 %v1396, %v1392
      %v1461 = vld [vmem:[%s2] sm:$0xf]
      %v1462 = vld [vmem:[%s2 + $0x4] sm:$0xf]
      %v1463 = vld [vmem:[%s2 + $0x8] sm:$0xf]
      %v1464 = vld [vmem:[%s2 + $0xc] sm:$0xf]
      %v1465 = vld [vmem:[%s2 + $0x10] sm:$0xf]
      %v1466 = vld [vmem:[%s2 + $0x14] sm:$0xf]
      %v1467 = vld [vmem:[%s2 + $0x18] sm:$0xf]
      %v1468 = vld [vmem:[%s2 + $0x1c] sm:$0xf]
      %v1469 = vld [vmem:[%s2 + $0x20] sm:$0xf]
      %v1470 = vld [vmem:[%s2 + $0x24] sm:$0xf]
      %v1471 = vld [vmem:[%s2 + $0x28] sm:$0xf]
      %v1472 = vld [vmem:[%s2 + $0x2c] sm:$0xf]
      %v1473 = vld [vmem:[%s2 + $0x30] sm:$0xf]
      %v1474 = vld [vmem:[%s2 + $0x34] sm:$0xf]
      %v1475 = vld [vmem:[%s2 + $0x38] sm:$0xf]
      %v1476 = vld [vmem:[%s2 + $0x3c] sm:$0xf]
      %v1477 = vld [vmem:[%s2 + $0x40] sm:$0xf]
      %v1478 = vld [vmem:[%s2 + $0x44] sm:$0xf]
      %v1479 = vld [vmem:[%s2 + $0x48] sm:$0xf]
      %v1480 = vld [vmem:[%s2 + $0x4c] sm:$0xf]
      %v1481 = vld [vmem:[%s2 + $0x50] sm:$0xf]
      %v1482 = vld [vmem:[%s2 + $0x54] sm:$0xf]
      %v1483 = vld [vmem:[%s2 + $0x58] sm:$0xf]
      %v1484 = vld [vmem:[%s2 + $0x5c] sm:$0xf]
      %v1485 = vld [vmem:[%s2 + $0x60] sm:$0xf]
      %v1486 = vld [vmem:[%s2 + $0x64] sm:$0xf]
      %v1487 = vld [vmem:[%s2 + $0x68] sm:$0xf]
      %v1488 = vld [vmem:[%s2 + $0x6c] sm:$0xf]
      %v1489 = vld [vmem:[%s2 + $0x70] sm:$0xf]
      %v1490 = vld [vmem:[%s2 + $0x74] sm:$0xf]
      %v1491 = vld [vmem:[%s2 + $0x78] sm:$0xf]
      %v1492 = vld [vmem:[%s2 + $0x7c] sm:$0xf]
      %v1493 = vld [vmem:[%s2 + $0x80] sm:$0xf]
      %v1494 = vld [vmem:[%s2 + $0x84] sm:$0xf]
      %v1495 = vld [vmem:[%s2 + $0x88] sm:$0xf]
      %v1496 = vld [vmem:[%s2 + $0x8c] sm:$0xf]
      %v1497 = vld [vmem:[%s2 + $0x90] sm:$0xf]
      %v1498 = vld [vmem:[%s2 + $0x94] sm:$0xf]
      %v1499 = vld [vmem:[%s2 + $0x98] sm:$0xf]
      %v1500 = vld [vmem:[%s2 + $0x9c] sm:$0xf]
      %v1501 = vld [vmem:[%s2 + $0xa0] sm:$0xf]
      %v1502 = vld [vmem:[%s2 + $0xa4] sm:$0xf]
      %v1503 = vld [vmem:[%s2 + $0xa8] sm:$0xf]
      %v1504 = vld [vmem:[%s2 + $0xac] sm:$0xf]
      %v1505 = vld [vmem:[%s2 + $0xb0] sm:$0xf]
      %v1506 = vld [vmem:[%s2 + $0xb4] sm:$0xf]
      %v1507 = vld [vmem:[%s2 + $0xb8] sm:$0xf]
      %v1508 = vld [vmem:[%s2 + $0xbc] sm:$0xf]
      %v1509 = vld [vmem:[%s2 + $0xc0] sm:$0xf]
      %v1510 = vld [vmem:[%s2 + $0xc4] sm:$0xf]
      %v1511 = vld [vmem:[%s2 + $0xc8] sm:$0xf]
      %v1512 = vld [vmem:[%s2 + $0xcc] sm:$0xf]
      %v1513 = vld [vmem:[%s2 + $0xd0] sm:$0xf]
      %v1514 = vld [vmem:[%s2 + $0xd4] sm:$0xf]
      %v1515 = vld [vmem:[%s2 + $0xd8] sm:$0xf]
      %v1516 = vld [vmem:[%s2 + $0xdc] sm:$0xf]
      %v1517 = vld [vmem:[%s2 + $0xe0] sm:$0xf]
      %v1518 = vld [vmem:[%s2 + $0xe4] sm:$0xf]
      %v1519 = vld [vmem:[%s2 + $0xe8] sm:$0xf]
      %v1520 = vld [vmem:[%s2 + $0xec] sm:$0xf]
      %v1521 = vld [vmem:[%s2 + $0xf0] sm:$0xf]
      %v1522 = vld [vmem:[%s2 + $0xf4] sm:$0xf]
      %v1523 = vld [vmem:[%s2 + $0xf8] sm:$0xf]
      %v1524 = vld [vmem:[%s2 + $0xfc] sm:$0xf]
      %v1589 = vunpack.c.l.b16 %v1461
      %v1590 = vunpack.c.l.b16 %v1462
      %v1591 = vunpack.c.l.b16 %v1463
      %v1592 = vunpack.c.l.b16 %v1464
      %v1593 = vunpack.c.l.b16 %v1465
      %v1594 = vunpack.c.l.b16 %v1466
      %v1595 = vunpack.c.l.b16 %v1467
      %v1596 = vunpack.c.l.b16 %v1468
      %v1597 = vunpack.c.l.b16 %v1469
      %v1598 = vunpack.c.l.b16 %v1470
      %v1599 = vunpack.c.l.b16 %v1471
      %v1600 = vunpack.c.l.b16 %v1472
      %v1601 = vunpack.c.l.b16 %v1473
      %v1602 = vunpack.c.l.b16 %v1474
      %v1603 = vunpack.c.l.b16 %v1475
      %v1604 = vunpack.c.l.b16 %v1476
      %v1605 = vunpack.c.l.b16 %v1477
      %v1606 = vunpack.c.l.b16 %v1478
      %v1607 = vunpack.c.l.b16 %v1479
      %v1608 = vunpack.c.l.b16 %v1480
      %v1609 = vunpack.c.l.b16 %v1481
      %v1610 = vunpack.c.l.b16 %v1482
      %v1611 = vunpack.c.l.b16 %v1483
      %v1612 = vunpack.c.l.b16 %v1484
      %v1613 = vunpack.c.l.b16 %v1485
      %v1614 = vunpack.c.l.b16 %v1486
      %v1615 = vunpack.c.l.b16 %v1487
      %v1616 = vunpack.c.l.b16 %v1488
      %v1617 = vunpack.c.l.b16 %v1489
      %v1618 = vunpack.c.l.b16 %v1490
      %v1619 = vunpack.c.l.b16 %v1491
      %v1620 = vunpack.c.l.b16 %v1492
      %v1621 = vunpack.c.l.b16 %v1493
      %v1622 = vunpack.c.l.b16 %v1494
      %v1623 = vunpack.c.l.b16 %v1495
      %v1624 = vunpack.c.l.b16 %v1496
      %v1625 = vunpack.c.l.b16 %v1497
      %v1626 = vunpack.c.l.b16 %v1498
      %v1627 = vunpack.c.l.b16 %v1499
      %v1628 = vunpack.c.l.b16 %v1500
      %v1629 = vunpack.c.l.b16 %v1501
      %v1630 = vunpack.c.l.b16 %v1502
      %v1631 = vunpack.c.l.b16 %v1503
      %v1632 = vunpack.c.l.b16 %v1504
      %v1633 = vunpack.c.l.b16 %v1505
      %v1634 = vunpack.c.l.b16 %v1506
      %v1635 = vunpack.c.l.b16 %v1507
      %v1636 = vunpack.c.l.b16 %v1508
      %v1637 = vunpack.c.l.b16 %v1509
      %v1638 = vunpack.c.l.b16 %v1510
      %v1639 = vunpack.c.l.b16 %v1511
      %v1640 = vunpack.c.l.b16 %v1512
      %v1641 = vunpack.c.l.b16 %v1513
      %v1642 = vunpack.c.l.b16 %v1514
      %v1643 = vunpack.c.l.b16 %v1515
      %v1644 = vunpack.c.l.b16 %v1516
      %v1645 = vunpack.c.l.b16 %v1517
      %v1646 = vunpack.c.l.b16 %v1518
      %v1647 = vunpack.c.l.b16 %v1519
      %v1648 = vunpack.c.l.b16 %v1520
      %v1649 = vunpack.c.l.b16 %v1521
      %v1650 = vunpack.c.l.b16 %v1522
      %v1651 = vunpack.c.l.b16 %v1523
      %v1652 = vunpack.c.l.b16 %v1524
      %v1653 = vpack.c.b16 %v1590, %v1589
      %v1654 = vpack.c.b16 %v1592, %v1591
      %v1655 = vpack.c.b16 %v1594, %v1593
      %v1656 = vpack.c.b16 %v1596, %v1595
      %v1657 = vpack.c.b16 %v1598, %v1597
      %v1658 = vpack.c.b16 %v1600, %v1599
      %v1659 = vpack.c.b16 %v1602, %v1601
      %v1660 = vpack.c.b16 %v1604, %v1603
      %v1661 = vpack.c.b16 %v1606, %v1605
      %v1662 = vpack.c.b16 %v1608, %v1607
      %v1663 = vpack.c.b16 %v1610, %v1609
      %v1664 = vpack.c.b16 %v1612, %v1611
      %v1665 = vpack.c.b16 %v1614, %v1613
      %v1666 = vpack.c.b16 %v1616, %v1615
      %v1667 = vpack.c.b16 %v1618, %v1617
      %v1668 = vpack.c.b16 %v1620, %v1619
      %v1669 = vpack.c.b16 %v1622, %v1621
      %v1670 = vpack.c.b16 %v1624, %v1623
      %v1671 = vpack.c.b16 %v1626, %v1625
      %v1672 = vpack.c.b16 %v1628, %v1627
      %v1673 = vpack.c.b16 %v1630, %v1629
      %v1674 = vpack.c.b16 %v1632, %v1631
      %v1675 = vpack.c.b16 %v1634, %v1633
      %v1676 = vpack.c.b16 %v1636, %v1635
      %v1677 = vpack.c.b16 %v1638, %v1637
      %v1678 = vpack.c.b16 %v1640, %v1639
      %v1679 = vpack.c.b16 %v1642, %v1641
      %v1680 = vpack.c.b16 %v1644, %v1643
      %v1681 = vpack.c.b16 %v1646, %v1645
      %v1682 = vpack.c.b16 %v1648, %v1647
      %v1683 = vpack.c.b16 %v1650, %v1649
      %v1684 = vpack.c.b16 %v1652, %v1651
      %1717 = vmatprep.subr.bf16.mxu0 0
      %1718 = vmatpush1.bf16.msra.mxu0 %v1653
      %1719 = vmatprep.subr.bf16.mxu0 0
      %1720 = vmatpush1.bf16.msra.mxu0 %v1654
      %1721 = vmatprep.subr.bf16.mxu0 0
      %1722 = vmatpush1.bf16.msra.mxu0 %v1655
      %1723 = vmatprep.subr.bf16.mxu0 0
      %1724 = vmatpush1.bf16.msra.mxu0 %v1656
      %1725 = vmatprep.subr.bf16.mxu0 0
      %1726 = vmatpush1.bf16.msra.mxu0 %v1657
      %1727 = vmatprep.subr.bf16.mxu0 0
      %1728 = vmatpush1.bf16.msra.mxu0 %v1658
      %1729 = vmatprep.subr.bf16.mxu0 0
      %1730 = vmatpush1.bf16.msra.mxu0 %v1659
      %1731 = vmatprep.subr.bf16.mxu0 0
      %1732 = vmatpush1.bf16.msra.mxu0 %v1660
      %1733 = vmatprep.subr.bf16.mxu0 0
      %1734 = vmatpush1.bf16.msra.mxu0 %v1661
      %1735 = vmatprep.subr.bf16.mxu0 0
      %1736 = vmatpush1.bf16.msra.mxu0 %v1662
      %1737 = vmatprep.subr.bf16.mxu0 0
      %1738 = vmatpush1.bf16.msra.mxu0 %v1663
      %1739 = vmatprep.subr.bf16.mxu0 0
      %1740 = vmatpush1.bf16.msra.mxu0 %v1664
      %1741 = vmatprep.subr.bf16.mxu0 0
      %1742 = vmatpush1.bf16.msra.mxu0 %v1665
      %1743 = vmatprep.subr.bf16.mxu0 0
      %1744 = vmatpush1.bf16.msra.mxu0 %v1666
      %1745 = vmatprep.subr.bf16.mxu0 0
      %1746 = vmatpush1.bf16.msra.mxu0 %v1667
      %1747 = vmatprep.subr.bf16.mxu0 0
      %1748 = vmatpush1.bf16.msra.mxu0 %v1668
      %1749 = vmatprep.mubr.bf16.mxu0 %v1398
      %1750 = vmatmul.mubr.bf16.gmra.mrb[0].mxu0 %v1397
      %v1751 = vpop.f32.mrb[0].mxu0
      %v1752 = vadd.f32 0.0, %v1751
      %v1753 = vpop.f32.mrb[0].mxu0
      %v1754 = vpop.f32.mrb[0].mxu0
      %v1755 = vadd.f32 0.0, %v1754
      %v1756 = vpop.f32.mrb[0].mxu0
      %1757 = vmatprep.mubr.bf16.mxu0 %v1402
      %1758 = vmatmul.mubr.bf16.gmra.mrb[0].mxu0 %v1401
      %v1759 = vpop.f32.mrb[0].mxu0
      %v1760 = vadd.f32 0.0, %v1759
      %v1761 = vpop.f32.mrb[0].mxu0
      %v1762 = vpop.f32.mrb[0].mxu0
      %v1763 = vadd.f32 0.0, %v1762
      %v1764 = vpop.f32.mrb[0].mxu0
      %1765 = vmatprep.mubr.bf16.mxu0 %v1406
      %1766 = vmatmul.mubr.bf16.gmra.mrb[0].mxu0 %v1405
      %v1767 = vpop.f32.mrb[0].mxu0
      %v1768 = vadd.f32 0.0, %v1767
      %v1769 = vpop.f32.mrb[0].mxu0
      %v1770 = vpop.f32.mrb[0].mxu0
      %v1771 = vadd.f32 0.0, %v1770
      %v1772 = vpop.f32.mrb[0].mxu0
      %1773 = vmatprep.mubr.bf16.mxu0 %v1410
      %1774 = vmatmul.mubr.bf16.gmra.mrb[0].mxu0 %v1409
      %v1775 = vpop.f32.mrb[0].mxu0
      %v1776 = vadd.f32 0.0, %v1775
      %v1777 = vpop.f32.mrb[0].mxu0
      %v1778 = vpop.f32.mrb[0].mxu0
      %v1779 = vadd.f32 0.0, %v1778
      %v1780 = vpop.f32.mrb[0].mxu0
      %1781 = vmatprep.mubr.bf16.mxu0 %v1414
      %1782 = vmatmul.mubr.bf16.gmra.mrb[0].mxu0 %v1413
      %v1783 = vpop.f32.mrb[0].mxu0
      %v1784 = vadd.f32 0.0, %v1783
      %v1785 = vpop.f32.mrb[0].mxu0
      %v1786 = vpop.f32.mrb[0].mxu0
      %v1787 = vadd.f32 0.0, %v1786
      %v1788 = vpop.f32.mrb[0].mxu0
      %1789 = vmatprep.mubr.bf16.mxu0 %v1418
      %1790 = vmatmul.mubr.bf16.gmra.mrb[0].mxu0 %v1417
      %v1791 = vpop.f32.mrb[0].mxu0
      %v1792 = vadd.f32 0.0, %v1791
      %v1793 = vpop.f32.mrb[0].mxu0
      %v1794 = vpop.f32.mrb[0].mxu0
      %v1795 = vadd.f32 0.0, %v1794
      %v1796 = vpop.f32.mrb[0].mxu0
      %1797 = vmatprep.mubr.bf16.mxu0 %v1422
      %1798 = vmatmul.mubr.bf16.gmra.mrb[0].mxu0 %v1421
      %v1799 = vpop.f32.mrb[0].mxu0
      %v1800 = vadd.f32 0.0, %v1799
      %v1801 = vpop.f32.mrb[0].mxu0
      %v1802 = vpop.f32.mrb[0].mxu0
      %v1803 = vadd.f32 0.0, %v1802
      %v1804 = vpop.f32.mrb[0].mxu0
      %1805 = vmatprep.mubr.bf16.mxu0 %v1426
      %1806 = vmatmul.mubr.bf16.gmra.mrb[0].mxu0 %v1425
      %v1807 = vpop.f32.mrb[0].mxu0
      %v1808 = vadd.f32 0.0, %v1807
      %v1809 = vpop.f32.mrb[0].mxu0
      %v1810 = vpop.f32.mrb[0].mxu0
      %v1811 = vadd.f32 0.0, %v1810
      %v1812 = vpop.f32.mrb[0].mxu0
      %1813 = vmatprep.mubr.bf16.mxu0 %v1430
      %1814 = vmatmul.mubr.bf16.gmra.mrb[0].mxu0 %v1429
      %v1815 = vpop.f32.mrb[0].mxu0
      %v1816 = vadd.f32 0.0, %v1815
      %v1817 = vpop.f32.mrb[0].mxu0
      %v1818 = vpop.f32.mrb[0].mxu0
      %v1819 = vadd.f32 0.0, %v1818
      %v1820 = vpop.f32.mrb[0].mxu0
      %1821 = vmatprep.mubr.bf16.mxu0 %v1434
      %1822 = vmatmul.mubr.bf16.gmra.mrb[0].mxu0 %v1433
      %v1823 = vpop.f32.mrb[0].mxu0
      %v1824 = vadd.f32 0.0, %v1823
      %v1825 = vpop.f32.mrb[0].mxu0
      %v1826 = vpop.f32.mrb[0].mxu0
      %v1827 = vadd.f32 0.0, %v1826
      %v1828 = vpop.f32.mrb[0].mxu0
      %1829 = vmatprep.mubr.bf16.mxu0 %v1438
      %1830 = vmatmul.mubr.bf16.gmra.mrb[0].mxu0 %v1437
      %v1831 = vpop.f32.mrb[0].mxu0
      %v1832 = vadd.f32 0.0, %v1831
      %v1833 = vpop.f32.mrb[0].mxu0
      %v1834 = vpop.f32.mrb[0].mxu0
      %v1835 = vadd.f32 0.0, %v1834
      %v1836 = vpop.f32.mrb[0].mxu0
      %1837 = vmatprep.mubr.bf16.mxu0 %v1442
      %1838 = vmatmul.mubr.bf16.gmra.mrb[0].mxu0 %v1441
      %v1839 = vpop.f32.mrb[0].mxu0
      %v1840 = vadd.f32 0.0, %v1839
      %v1841 = vpop.f32.mrb[0].mxu0
      %v1842 = vpop.f32.mrb[0].mxu0
      %v1843 = vadd.f32 0.0, %v1842
      %v1844 = vpop.f32.mrb[0].mxu0
      %1845 = vmatprep.mubr.bf16.mxu0 %v1446
      %1846 = vmatmul.mubr.bf16.gmra.mrb[0].mxu0 %v1445
      %v1847 = vpop.f32.mrb[0].mxu0
      %v1848 = vadd.f32 0.0, %v1847
      %v1849 = vpop.f32.mrb[0].mxu0
      %v1850 = vpop.f32.mrb[0].mxu0
      %v1851 = vadd.f32 0.0, %v1850
      %v1852 = vpop.f32.mrb[0].mxu0
      %1853 = vmatprep.mubr.bf16.mxu0 %v1450
      %1854 = vmatmul.mubr.bf16.gmra.mrb[0].mxu0 %v1449
      %v1855 = vpop.f32.mrb[0].mxu0
      %v1856 = vadd.f32 0.0, %v1855
      %v1857 = vpop.f32.mrb[0].mxu0
      %v1858 = vpop.f32.mrb[0].mxu0
      %v1859 = vadd.f32 0.0, %v1858
      %v1860 = vpop.f32.mrb[0].mxu0
      %1861 = vmatprep.mubr.bf16.mxu0 %v1454
      %1862 = vmatmul.mubr.bf16.gmra.mrb[0].mxu0 %v1453
      %v1863 = vpop.f32.mrb[0].mxu0
      %v1864 = vadd.f32 0.0, %v1863
      %v1865 = vpop.f32.mrb[0].mxu0
      %v1866 = vpop.f32.mrb[0].mxu0
      %v1867 = vadd.f32 0.0, %v1866
      %v1868 = vpop.f32.mrb[0].mxu0
      %1869 = vmatprep.mubr.bf16.mxu0 %v1458
      %1870 = vmatmul.mubr.bf16.gmra.mrb[0].mxu0 %v1457
      %v1871 = vpop.f32.mrb[0].mxu0
      %v1872 = vadd.f32 0.0, %v1871
      %v1873 = vpop.f32.mrb[0].mxu0
      %v1874 = vpop.f32.mrb[0].mxu0
      %v1875 = vadd.f32 0.0, %v1874
      %v1876 = vpop.f32.mrb[0].mxu0
      %1877 = vdwg.mxu0
      %1878 = vmatprep.subr.bf16.mxu0 0
      %1879 = vmatpush1.bf16.msra.mxu0 %v1669
      %1880 = vmatprep.subr.bf16.mxu0 0
      %1881 = vmatpush1.bf16.msra.mxu0 %v1670
      %1882 = vmatprep.subr.bf16.mxu0 0
      %1883 = vmatpush1.bf16.msra.mxu0 %v1671
      %1884 = vmatprep.subr.bf16.mxu0 0
      %1885 = vmatpush1.bf16.msra.mxu0 %v1672
      %1886 = vmatprep.subr.bf16.mxu0 0
      %1887 = vmatpush1.bf16.msra.mxu0 %v1673
      %1888 = vmatprep.subr.bf16.mxu0 0
      %1889 = vmatpush1.bf16.msra.mxu0 %v1674
      %1890 = vmatprep.subr.bf16.mxu0 0
      %1891 = vmatpush1.bf16.msra.mxu0 %v1675
      %1892 = vmatprep.subr.bf16.mxu0 0
      %1893 = vmatpush1.bf16.msra.mxu0 %v1676
      %1894 = vmatprep.subr.bf16.mxu0 0
      %1895 = vmatpush1.bf16.msra.mxu0 %v1677
      %1896 = vmatprep.subr.bf16.mxu0 0
      %1897 = vmatpush1.bf16.msra.mxu0 %v1678
      %1898 = vmatprep.subr.bf16.mxu0 0
      %1899 = vmatpush1.bf16.msra.mxu0 %v1679
      %1900 = vmatprep.subr.bf16.mxu0 0
      %1901 = vmatpush1.bf16.msra.mxu0 %v1680
      %1902 = vmatprep.subr.bf16.mxu0 0
      %1903 = vmatpush1.bf16.msra.mxu0 %v1681
      %1904 = vmatprep.subr.bf16.mxu0 0
      %1905 = vmatpush1.bf16.msra.mxu0 %v1682
      %1906 = vmatprep.subr.bf16.mxu0 0
      %1907 = vmatpush1.bf16.msra.mxu0 %v1683
      %1908 = vmatprep.subr.bf16.mxu0 0
      %1909 = vmatpush1.bf16.msra.mxu0 %v1684
      %1910 = vmatprep.mubr.bf16.mxu0 %v1400
      %1911 = vmatmul.mubr.bf16.gmra.mrb[0].mxu0 %v1399
      %v1912 = vpop.f32.mrb[0].mxu0
      %v1913 = vadd.f32 %v1752, %v1912
      %v1914 = vpop.f32.mrb[0].mxu0
      %v1915 = vpop.f32.mrb[0].mxu0
      %v1916 = vadd.f32 %v1755, %v1915
      %v1917 = vpop.f32.mrb[0].mxu0
      %1918 = vmatprep.mubr.bf16.mxu0 %v1404
      %1919 = vmatmul.mubr.bf16.gmra.mrb[0].mxu0 %v1403
      %v1920 = vpop.f32.mrb[0].mxu0
      %v1921 = vadd.f32 %v1760, %v1920
      %v1922 = vpop.f32.mrb[0].mxu0
      %v1923 = vpop.f32.mrb[0].mxu0
      %v1924 = vadd.f32 %v1763, %v1923
      %v1925 = vpop.f32.mrb[0].mxu0
      %1926 = vmatprep.mubr.bf16.mxu0 %v1408
      %1927 = vmatmul.mubr.bf16.gmra.mrb[0].mxu0 %v1407
      %v1928 = vpop.f32.mrb[0].mxu0
      %v1929 = vadd.f32 %v1768, %v1928
      %v1930 = vpop.f32.mrb[0].mxu0
      %v1931 = vpop.f32.mrb[0].mxu0
      %v1932 = vadd.f32 %v1771, %v1931
      %v1933 = vpop.f32.mrb[0].mxu0
      %1934 = vmatprep.mubr.bf16.mxu0 %v1412
      %1935 = vmatmul.mubr.bf16.gmra.mrb[0].mxu0 %v1411
      %v1936 = vpop.f32.mrb[0].mxu0
      %v1937 = vadd.f32 %v1776, %v1936
      %v1938 = vpop.f32.mrb[0].mxu0
      %v1939 = vpop.f32.mrb[0].mxu0
      %v1940 = vadd.f32 %v1779, %v1939
      %v1941 = vpop.f32.mrb[0].mxu0
      %1942 = vmatprep.mubr.bf16.mxu0 %v1416
      %1943 = vmatmul.mubr.bf16.gmra.mrb[0].mxu0 %v1415
      %v1944 = vpop.f32.mrb[0].mxu0
      %v1945 = vadd.f32 %v1784, %v1944
      %v1946 = vpop.f32.mrb[0].mxu0
      %v1947 = vpop.f32.mrb[0].mxu0
      %v1948 = vadd.f32 %v1787, %v1947
      %v1949 = vpop.f32.mrb[0].mxu0
      %1950 = vmatprep.mubr.bf16.mxu0 %v1420
      %1951 = vmatmul.mubr.bf16.gmra.mrb[0].mxu0 %v1419
      %v1952 = vpop.f32.mrb[0].mxu0
      %v1953 = vadd.f32 %v1792, %v1952
      %v1954 = vpop.f32.mrb[0].mxu0
      %v1955 = vpop.f32.mrb[0].mxu0
      %v1956 = vadd.f32 %v1795, %v1955
      %v1957 = vpop.f32.mrb[0].mxu0
      %1958 = vmatprep.mubr.bf16.mxu0 %v1424
      %1959 = vmatmul.mubr.bf16.gmra.mrb[0].mxu0 %v1423
      %v1960 = vpop.f32.mrb[0].mxu0
      %v1961 = vadd.f32 %v1800, %v1960
      %v1962 = vpop.f32.mrb[0].mxu0
      %v1963 = vpop.f32.mrb[0].mxu0
      %v1964 = vadd.f32 %v1803, %v1963
      %v1965 = vpop.f32.mrb[0].mxu0
      %1966 = vmatprep.mubr.bf16.mxu0 %v1428
      %1967 = vmatmul.mubr.bf16.gmra.mrb[0].mxu0 %v1427
      %v1968 = vpop.f32.mrb[0].mxu0
      %v1969 = vadd.f32 %v1808, %v1968
      %v1970 = vpop.f32.mrb[0].mxu0
      %v1971 = vpop.f32.mrb[0].mxu0
      %v1972 = vadd.f32 %v1811, %v1971
      %v1973 = vpop.f32.mrb[0].mxu0
      %1974 = vmatprep.mubr.bf16.mxu0 %v1432
      %1975 = vmatmul.mubr.bf16.gmra.mrb[0].mxu0 %v1431
      %v1976 = vpop.f32.mrb[0].mxu0
      %v1977 = vadd.f32 %v1816, %v1976
      %v1978 = vpop.f32.mrb[0].mxu0
      %v1979 = vpop.f32.mrb[0].mxu0
      %v1980 = vadd.f32 %v1819, %v1979
      %v1981 = vpop.f32.mrb[0].mxu0
      %1982 = vmatprep.mubr.bf16.mxu0 %v1436
      %1983 = vmatmul.mubr.bf16.gmra.mrb[0].mxu0 %v1435
      %v1984 = vpop.f32.mrb[0].mxu0
      %v1985 = vadd.f32 %v1824, %v1984
      %v1986 = vpop.f32.mrb[0].mxu0
      %v1987 = vpop.f32.mrb[0].mxu0
      %v1988 = vadd.f32 %v1827, %v1987
      %v1989 = vpop.f32.mrb[0].mxu0
      %1990 = vmatprep.mubr.bf16.mxu0 %v1440
      %1991 = vmatmul.mubr.bf16.gmra.mrb[0].mxu0 %v1439
      %v1992 = vpop.f32.mrb[0].mxu0
      %v1993 = vadd.f32 %v1832, %v1992
      %v1994 = vpop.f32.mrb[0].mxu0
      %v1995 = vpop.f32.mrb[0].mxu0
      %v1996 = vadd.f32 %v1835, %v1995
      %v1997 = vpop.f32.mrb[0].mxu0
      %1998 = vmatprep.mubr.bf16.mxu0 %v1444
      %1999 = vmatmul.mubr.bf16.gmra.mrb[0].mxu0 %v1443
      %v2000 = vpop.f32.mrb[0].mxu0
      %v2001 = vadd.f32 %v1840, %v2000
      %v2002 = vpop.f32.mrb[0].mxu0
      %v2003 = vpop.f32.mrb[0].mxu0
      %v2004 = vadd.f32 %v1843, %v2003
      %v2005 = vpop.f32.mrb[0].mxu0
      %2006 = vmatprep.mubr.bf16.mxu0 %v1448
      %2007 = vmatmul.mubr.bf16.gmra.mrb[0].mxu0 %v1447
      %v2008 = vpop.f32.mrb[0].mxu0
      %v2009 = vadd.f32 %v1848, %v2008
      %v2010 = vpop.f32.mrb[0].mxu0
      %v2011 = vpop.f32.mrb[0].mxu0
      %v2012 = vadd.f32 %v1851, %v2011
      %v2013 = vpop.f32.mrb[0].mxu0
      %2014 = vmatprep.mubr.bf16.mxu0 %v1452
      %2015 = vmatmul.mubr.bf16.gmra.mrb[0].mxu0 %v1451
      %v2016 = vpop.f32.mrb[0].mxu0
      %v2017 = vadd.f32 %v1856, %v2016
      %v2018 = vpop.f32.mrb[0].mxu0
      %v2019 = vpop.f32.mrb[0].mxu0
      %v2020 = vadd.f32 %v1859, %v2019
      %v2021 = vpop.f32.mrb[0].mxu0
      %2022 = vmatprep.mubr.bf16.mxu0 %v1456
      %2023 = vmatmul.mubr.bf16.gmra.mrb[0].mxu0 %v1455
      %v2024 = vpop.f32.mrb[0].mxu0
      %v2025 = vadd.f32 %v1864, %v2024
      %v2026 = vpop.f32.mrb[0].mxu0
      %v2027 = vpop.f32.mrb[0].mxu0
      %v2028 = vadd.f32 %v1867, %v2027
      %v2029 = vpop.f32.mrb[0].mxu0
      %2030 = vmatprep.mubr.bf16.mxu0 %v1460
      %2031 = vmatmul.mubr.bf16.gmra.mrb[0].mxu0 %v1459
      %v2032 = vpop.f32.mrb[0].mxu0
      %v2033 = vadd.f32 %v1872, %v2032
      %v2034 = vpop.f32.mrb[0].mxu0
      %v2035 = vpop.f32.mrb[0].mxu0
      %v2036 = vadd.f32 %v1875, %v2035
      %v2037 = vpop.f32.mrb[0].mxu0
      %2038 = vdwg.mxu0
      %v2039 = vmax.f32 %v1913, 0.0
      %v2040 = vmax.f32 %v1916, 0.0
      %v2041 = vmax.f32 %v1921, 0.0
      %v2042 = vmax.f32 %v1924, 0.0
      %v2043 = vmax.f32 %v1929, 0.0
      %v2044 = vmax.f32 %v1932, 0.0
      %v2045 = vmax.f32 %v1937, 0.0
      %v2046 = vmax.f32 %v1940, 0.0
      %v2047 = vmax.f32 %v1945, 0.0
      %v2048 = vmax.f32 %v1948, 0.0
      %v2049 = vmax.f32 %v1953, 0.0
      %v2050 = vmax.f32 %v1956, 0.0
      %v2051 = vmax.f32 %v1961, 0.0
      %v2052 = vmax.f32 %v1964, 0.0
      %v2053 = vmax.f32 %v1969, 0.0
      %v2054 = vmax.f32 %v1972, 0.0
      %v2055 = vmax.f32 %v1977, 0.0
      %v2056 = vmax.f32 %v1980, 0.0
      %v2057 = vmax.f32 %v1985, 0.0
      %v2058 = vmax.f32 %v1988, 0.0
      %v2059 = vmax.f32 %v1993, 0.0
      %v2060 = vmax.f32 %v1996, 0.0
      %v2061 = vmax.f32 %v2001, 0.0
      %v2062 = vmax.f32 %v2004, 0.0
      %v2063 = vmax.f32 %v2009, 0.0
      %v2064 = vmax.f32 %v2012, 0.0
      %v2065 = vmax.f32 %v2017, 0.0
      %v2066 = vmax.f32 %v2020, 0.0
      %v2067 = vmax.f32 %v2025, 0.0
      %v2068 = vmax.f32 %v2028, 0.0
      %v2069 = vmax.f32 %v2033, 0.0
      %v2070 = vmax.f32 %v2036, 0.0
      %2103 = vrot.lane.b32.xlu0 %v1913, 96
      %v2104 = vpop.permute.xlu0 %2103
      %2105 = vrot.lane.b32.xlu0 %v1916, 96
      %v2106 = vpop.permute.xlu0 %2105
      %2107 = vrot.lane.b32.xlu0 %v1921, 96
      %v2108 = vpop.permute.xlu0 %2107
      %2109 = vrot.lane.b32.xlu0 %v1924, 96
      %v2110 = vpop.permute.xlu0 %2109
      %2111 = vrot.lane.b32.xlu0 %v1929, 96
      %v2112 = vpop.permute.xlu0 %2111
      %2113 = vrot.lane.b32.xlu0 %v1932, 96
      %v2114 = vpop.permute.xlu0 %2113
      %2115 = vrot.lane.b32.xlu0 %v1937, 96
      %v2116 = vpop.permute.xlu0 %2115
      %2117 = vrot.lane.b32.xlu0 %v1940, 96
      %v2118 = vpop.permute.xlu0 %2117
      %2119 = vrot.lane.b32.xlu0 %v1945, 96
      %v2120 = vpop.permute.xlu0 %2119
      %2121 = vrot.lane.b32.xlu0 %v1948, 96
      %v2122 = vpop.permute.xlu0 %2121
      %2123 = vrot.lane.b32.xlu0 %v1953, 96
      %v2124 = vpop.permute.xlu0 %2123
      %2125 = vrot.lane.b32.xlu0 %v1956, 96
      %v2126 = vpop.permute.xlu0 %2125
      %2127 = vrot.lane.b32.xlu0 %v1961, 96
      %v2128 = vpop.permute.xlu0 %2127
      %2129 = vrot.lane.b32.xlu0 %v1964, 96
      %v2130 = vpop.permute.xlu0 %2129
      %2131 = vrot.lane.b32.xlu0 %v1969, 96
      %v2132 = vpop.permute.xlu0 %2131
      %2133 = vrot.lane.b32.xlu0 %v1972, 96
      %v2134 = vpop.permute.xlu0 %2133
      %2135 = vrot.lane.b32.xlu0 %v1977, 96
      %v2136 = vpop.permute.xlu0 %2135
      %2137 = vrot.lane.b32.xlu0 %v1980, 96
      %v2138 = vpop.permute.xlu0 %2137
      %2139 = vrot.lane.b32.xlu0 %v1985, 96
      %v2140 = vpop.permute.xlu0 %2139
      %2141 = vrot.lane.b32.xlu0 %v1988, 96
      %v2142 = vpop.permute.xlu0 %2141
      %2143 = vrot.lane.b32.xlu0 %v1993, 96
      %v2144 = vpop.permute.xlu0 %2143
      %2145 = vrot.lane.b32.xlu0 %v1996, 96
      %v2146 = vpop.permute.xlu0 %2145
      %2147 = vrot.lane.b32.xlu0 %v2001, 96
      %v2148 = vpop.permute.xlu0 %2147
      %2149 = vrot.lane.b32.xlu0 %v2004, 96
      %v2150 = vpop.permute.xlu0 %2149
      %2151 = vrot.lane.b32.xlu0 %v2009, 96
      %v2152 = vpop.permute.xlu0 %2151
      %2153 = vrot.lane.b32.xlu0 %v2012, 96
      %v2154 = vpop.permute.xlu0 %2153
      %2155 = vrot.lane.b32.xlu0 %v2017, 96
      %v2156 = vpop.permute.xlu0 %2155
      %2157 = vrot.lane.b32.xlu0 %v2020, 96
      %v2158 = vpop.permute.xlu0 %2157
      %2159 = vrot.lane.b32.xlu0 %v2025, 96
      %v2160 = vpop.permute.xlu0 %2159
      %2161 = vrot.lane.b32.xlu0 %v2028, 96
      %v2162 = vpop.permute.xlu0 %2161
      %2163 = vrot.lane.b32.xlu0 %v2033, 96
      %v2164 = vpop.permute.xlu0 %2163
      %2165 = vrot.lane.b32.xlu0 %v2036, 96
      %v2166 = vpop.permute.xlu0 %2165
      %v2199 = vmul.f32 %v2039, %v2104
      %v2200 = vmul.f32 %v2040, %v2106
      %v2201 = vmul.f32 %v2041, %v2108
      %v2202 = vmul.f32 %v2042, %v2110
      %v2203 = vmul.f32 %v2043, %v2112
      %v2204 = vmul.f32 %v2044, %v2114
      %v2205 = vmul.f32 %v2045, %v2116
      %v2206 = vmul.f32 %v2046, %v2118
      %v2207 = vmul.f32 %v2047, %v2120
      %v2208 = vmul.f32 %v2048, %v2122
      %v2209 = vmul.f32 %v2049, %v2124
      %v2210 = vmul.f32 %v2050, %v2126
      %v2211 = vmul.f32 %v2051, %v2128
      %v2212 = vmul.f32 %v2052, %v2130
      %v2213 = vmul.f32 %v2053, %v2132
      %v2214 = vmul.f32 %v2054, %v2134
      %v2215 = vmul.f32 %v2055, %v2136
      %v2216 = vmul.f32 %v2056, %v2138
      %v2217 = vmul.f32 %v2057, %v2140
      %v2218 = vmul.f32 %v2058, %v2142
      %v2219 = vmul.f32 %v2059, %v2144
      %v2220 = vmul.f32 %v2060, %v2146
      %v2221 = vmul.f32 %v2061, %v2148
      %v2222 = vmul.f32 %v2062, %v2150
      %v2223 = vmul.f32 %v2063, %v2152
      %v2224 = vmul.f32 %v2064, %v2154
      %v2225 = vmul.f32 %v2065, %v2156
      %v2226 = vmul.f32 %v2066, %v2158
      %v2227 = vmul.f32 %v2067, %v2160
      %v2228 = vmul.f32 %v2068, %v2162
      %v2229 = vmul.f32 %v2069, %v2164
      %v2230 = vmul.f32 %v2070, %v2166
      %vm2231 = vcmask 261120
      %v2232 = vsel %vm2231, %v2199, 0.0
      %2233 = vadd.xlane.f32.xlu0 %v2232
      %v2234 = vpop.xlane.xlu0 %2233
      %v2235 = vsel %vm2231, %v2200, 0.0
      %2236 = vadd.xlane.f32.xlu0 %v2235
      %v2237 = vpop.xlane.xlu0 %2236
      %v2238 = vsel %vm2231, %v2201, 0.0
      %2239 = vadd.xlane.f32.xlu0 %v2238
      %v2240 = vpop.xlane.xlu0 %2239
      %v2241 = vsel %vm2231, %v2202, 0.0
      %2242 = vadd.xlane.f32.xlu0 %v2241
      %v2243 = vpop.xlane.xlu0 %2242
      %v2244 = vsel %vm2231, %v2203, 0.0
      %2245 = vadd.xlane.f32.xlu0 %v2244
      %v2246 = vpop.xlane.xlu0 %2245
      %v2247 = vsel %vm2231, %v2204, 0.0
      %2248 = vadd.xlane.f32.xlu0 %v2247
      %v2249 = vpop.xlane.xlu0 %2248
      %v2250 = vsel %vm2231, %v2205, 0.0
      %2251 = vadd.xlane.f32.xlu0 %v2250
      %v2252 = vpop.xlane.xlu0 %2251
      %v2253 = vsel %vm2231, %v2206, 0.0
      %2254 = vadd.xlane.f32.xlu0 %v2253
      %v2255 = vpop.xlane.xlu0 %2254
      %v2256 = vsel %vm2231, %v2207, 0.0
      %2257 = vadd.xlane.f32.xlu0 %v2256
      %v2258 = vpop.xlane.xlu0 %2257
      %v2259 = vsel %vm2231, %v2208, 0.0
      %2260 = vadd.xlane.f32.xlu0 %v2259
      %v2261 = vpop.xlane.xlu0 %2260
      %v2262 = vsel %vm2231, %v2209, 0.0
      %2263 = vadd.xlane.f32.xlu0 %v2262
      %v2264 = vpop.xlane.xlu0 %2263
      %v2265 = vsel %vm2231, %v2210, 0.0
      %2266 = vadd.xlane.f32.xlu0 %v2265
      %v2267 = vpop.xlane.xlu0 %2266
      %v2268 = vsel %vm2231, %v2211, 0.0
      %2269 = vadd.xlane.f32.xlu0 %v2268
      %v2270 = vpop.xlane.xlu0 %2269
      %v2271 = vsel %vm2231, %v2212, 0.0
      %2272 = vadd.xlane.f32.xlu0 %v2271
      %v2273 = vpop.xlane.xlu0 %2272
      %v2274 = vsel %vm2231, %v2213, 0.0
      %2275 = vadd.xlane.f32.xlu0 %v2274
      %v2276 = vpop.xlane.xlu0 %2275
      %v2277 = vsel %vm2231, %v2214, 0.0
      %2278 = vadd.xlane.f32.xlu0 %v2277
      %v2279 = vpop.xlane.xlu0 %2278
      %v2280 = vsel %vm2231, %v2215, 0.0
      %2281 = vadd.xlane.f32.xlu0 %v2280
      %v2282 = vpop.xlane.xlu0 %2281
      %v2283 = vsel %vm2231, %v2216, 0.0
      %2284 = vadd.xlane.f32.xlu0 %v2283
      %v2285 = vpop.xlane.xlu0 %2284
      %v2286 = vsel %vm2231, %v2217, 0.0
      %2287 = vadd.xlane.f32.xlu0 %v2286
      %v2288 = vpop.xlane.xlu0 %2287
      %v2289 = vsel %vm2231, %v2218, 0.0
      %2290 = vadd.xlane.f32.xlu0 %v2289
      %v2291 = vpop.xlane.xlu0 %2290
      %v2292 = vsel %vm2231, %v2219, 0.0
      %2293 = vadd.xlane.f32.xlu0 %v2292
      %v2294 = vpop.xlane.xlu0 %2293
      %v2295 = vsel %vm2231, %v2220, 0.0
      %2296 = vadd.xlane.f32.xlu0 %v2295
      %v2297 = vpop.xlane.xlu0 %2296
      %v2298 = vsel %vm2231, %v2221, 0.0
      %2299 = vadd.xlane.f32.xlu0 %v2298
      %v2300 = vpop.xlane.xlu0 %2299
      %v2301 = vsel %vm2231, %v2222, 0.0
      %2302 = vadd.xlane.f32.xlu0 %v2301
      %v2303 = vpop.xlane.xlu0 %2302
      %v2304 = vsel %vm2231, %v2223, 0.0
      %2305 = vadd.xlane.f32.xlu0 %v2304
      %v2306 = vpop.xlane.xlu0 %2305
      %v2307 = vsel %vm2231, %v2224, 0.0
      %2308 = vadd.xlane.f32.xlu0 %v2307
      %v2309 = vpop.xlane.xlu0 %2308
      %v2310 = vsel %vm2231, %v2225, 0.0
      %2311 = vadd.xlane.f32.xlu0 %v2310
      %v2312 = vpop.xlane.xlu0 %2311
      %v2313 = vsel %vm2231, %v2226, 0.0
      %2314 = vadd.xlane.f32.xlu0 %v2313
      %v2315 = vpop.xlane.xlu0 %2314
      %v2316 = vsel %vm2231, %v2227, 0.0
      %2317 = vadd.xlane.f32.xlu0 %v2316
      %v2318 = vpop.xlane.xlu0 %2317
      %v2319 = vsel %vm2231, %v2228, 0.0
      %2320 = vadd.xlane.f32.xlu0 %v2319
      %v2321 = vpop.xlane.xlu0 %2320
      %v2322 = vsel %vm2231, %v2229, 0.0
      %2323 = vadd.xlane.f32.xlu0 %v2322
      %v2324 = vpop.xlane.xlu0 %2323
      %v2325 = vsel %vm2231, %v2230, 0.0
      %2326 = vadd.xlane.f32.xlu0 %v2325
      %v2327 = vpop.xlane.xlu0 %2326
      %v2328 = vadd.f32 %v2234, %v1913
      %v2329 = vadd.f32 %v2237, %v1916
      %v2330 = vadd.f32 %v2240, %v1921
      %v2331 = vadd.f32 %v2243, %v1924
      %v2332 = vadd.f32 %v2246, %v1929
      %v2333 = vadd.f32 %v2249, %v1932
      %v2334 = vadd.f32 %v2252, %v1937
      %v2335 = vadd.f32 %v2255, %v1940
      %v2336 = vadd.f32 %v2258, %v1945
      %v2337 = vadd.f32 %v2261, %v1948
      %v2338 = vadd.f32 %v2264, %v1953
      %v2339 = vadd.f32 %v2267, %v1956
      %v2340 = vadd.f32 %v2270, %v1961
      %v2341 = vadd.f32 %v2273, %v1964
      %v2342 = vadd.f32 %v2276, %v1969
      %v2343 = vadd.f32 %v2279, %v1972
      %v2344 = vadd.f32 %v2282, %v1977
      %v2345 = vadd.f32 %v2285, %v1980
      %v2346 = vadd.f32 %v2288, %v1985
      %v2347 = vadd.f32 %v2291, %v1988
      %v2348 = vadd.f32 %v2294, %v1993
      %v2349 = vadd.f32 %v2297, %v1996
      %v2350 = vadd.f32 %v2300, %v2001
      %v2351 = vadd.f32 %v2303, %v2004
      %v2352 = vadd.f32 %v2306, %v2009
      %v2353 = vadd.f32 %v2309, %v2012
      %v2354 = vadd.f32 %v2312, %v2017
      %v2355 = vadd.f32 %v2315, %v2020
      %v2356 = vadd.f32 %v2318, %v2025
      %v2357 = vadd.f32 %v2321, %v2028
      %v2358 = vadd.f32 %v2324, %v2033
      %v2359 = vadd.f32 %v2327, %v2036
      %2392 = vrot.lane.b32.xlu0 %v2328, 64
      %v2393 = vpop.permute.xlu0 %2392
      %2394 = vrot.lane.b32.xlu0 %v2329, 64
      %v2395 = vpop.permute.xlu0 %2394
      %2396 = vrot.lane.b32.xlu0 %v2330, 64
      %v2397 = vpop.permute.xlu0 %2396
      %2398 = vrot.lane.b32.xlu0 %v2331, 64
      %v2399 = vpop.permute.xlu0 %2398
      %2400 = vrot.lane.b32.xlu0 %v2332, 64
      %v2401 = vpop.permute.xlu0 %2400
      %2402 = vrot.lane.b32.xlu0 %v2333, 64
      %v2403 = vpop.permute.xlu0 %2402
      %2404 = vrot.lane.b32.xlu0 %v2334, 64
      %v2405 = vpop.permute.xlu0 %2404
      %2406 = vrot.lane.b32.xlu0 %v2335, 64
      %v2407 = vpop.permute.xlu0 %2406
      %2408 = vrot.lane.b32.xlu0 %v2336, 64
      %v2409 = vpop.permute.xlu0 %2408
      %2410 = vrot.lane.b32.xlu0 %v2337, 64
      %v2411 = vpop.permute.xlu0 %2410
      %2412 = vrot.lane.b32.xlu0 %v2338, 64
      %v2413 = vpop.permute.xlu0 %2412
      %2414 = vrot.lane.b32.xlu0 %v2339, 64
      %v2415 = vpop.permute.xlu0 %2414
      %2416 = vrot.lane.b32.xlu0 %v2340, 64
      %v2417 = vpop.permute.xlu0 %2416
      %2418 = vrot.lane.b32.xlu0 %v2341, 64
      %v2419 = vpop.permute.xlu0 %2418
      %2420 = vrot.lane.b32.xlu0 %v2342, 64
      %v2421 = vpop.permute.xlu0 %2420
      %2422 = vrot.lane.b32.xlu0 %v2343, 64
      %v2423 = vpop.permute.xlu0 %2422
      %2424 = vrot.lane.b32.xlu0 %v2344, 64
      %v2425 = vpop.permute.xlu0 %2424
      %2426 = vrot.lane.b32.xlu0 %v2345, 64
      %v2427 = vpop.permute.xlu0 %2426
      %2428 = vrot.lane.b32.xlu0 %v2346, 64
      %v2429 = vpop.permute.xlu0 %2428
      %2430 = vrot.lane.b32.xlu0 %v2347, 64
      %v2431 = vpop.permute.xlu0 %2430
      %2432 = vrot.lane.b32.xlu0 %v2348, 64
      %v2433 = vpop.permute.xlu0 %2432
      %2434 = vrot.lane.b32.xlu0 %v2349, 64
      %v2435 = vpop.permute.xlu0 %2434
      %2436 = vrot.lane.b32.xlu0 %v2350, 64
      %v2437 = vpop.permute.xlu0 %2436
      %2438 = vrot.lane.b32.xlu0 %v2351, 64
      %v2439 = vpop.permute.xlu0 %2438
      %2440 = vrot.lane.b32.xlu0 %v2352, 64
      %v2441 = vpop.permute.xlu0 %2440
      %2442 = vrot.lane.b32.xlu0 %v2353, 64
      %v2443 = vpop.permute.xlu0 %2442
      %2444 = vrot.lane.b32.xlu0 %v2354, 64
      %v2445 = vpop.permute.xlu0 %2444
      %2446 = vrot.lane.b32.xlu0 %v2355, 64
      %v2447 = vpop.permute.xlu0 %2446
      %2448 = vrot.lane.b32.xlu0 %v2356, 64
      %v2449 = vpop.permute.xlu0 %2448
      %2450 = vrot.lane.b32.xlu0 %v2357, 64
      %v2451 = vpop.permute.xlu0 %2450
      %2452 = vrot.lane.b32.xlu0 %v2358, 64
      %v2453 = vpop.permute.xlu0 %2452
      %2454 = vrot.lane.b32.xlu0 %v2359, 64
      %v2455 = vpop.permute.xlu0 %2454
      %vm2488 = vcmask 7168
      %2489 = vst.msk [vmem:[%s172] sm:$0xff] %vm2488, %v2393
      %2490 = vst.msk [vmem:[%s172 + $0x8] sm:$0xff] %vm2488, %v2395
      %2491 = vst.msk [vmem:[%s172 + $0x10] sm:$0xff] %vm2488, %v2397
      %2492 = vst.msk [vmem:[%s172 + $0x18] sm:$0xff] %vm2488, %v2399
      %2493 = vst.msk [vmem:[%s172 + $0x20] sm:$0xff] %vm2488, %v2401
      %2494 = vst.msk [vmem:[%s172 + $0x28] sm:$0xff] %vm2488, %v2403
      %2495 = vst.msk [vmem:[%s172 + $0x30] sm:$0xff] %vm2488, %v2405
      %2496 = vst.msk [vmem:[%s172 + $0x38] sm:$0xff] %vm2488, %v2407
      %2497 = vst.msk [vmem:[%s172 + $0x40] sm:$0xff] %vm2488, %v2409
      %2498 = vst.msk [vmem:[%s172 + $0x48] sm:$0xff] %vm2488, %v2411
      %2499 = vst.msk [vmem:[%s172 + $0x50] sm:$0xff] %vm2488, %v2413
      %2500 = vst.msk [vmem:[%s172 + $0x58] sm:$0xff] %vm2488, %v2415
      %2501 = vst.msk [vmem:[%s172 + $0x60] sm:$0xff] %vm2488, %v2417
      %2502 = vst.msk [vmem:[%s172 + $0x68] sm:$0xff] %vm2488, %v2419
      %2503 = vst.msk [vmem:[%s172 + $0x70] sm:$0xff] %vm2488, %v2421
      %2504 = vst.msk [vmem:[%s172 + $0x78] sm:$0xff] %vm2488, %v2423
      %2505 = vst.msk [vmem:[%s172 + $0x80] sm:$0xff] %vm2488, %v2425
      %2506 = vst.msk [vmem:[%s172 + $0x88] sm:$0xff] %vm2488, %v2427
      %2507 = vst.msk [vmem:[%s172 + $0x90] sm:$0xff] %vm2488, %v2429
      %2508 = vst.msk [vmem:[%s172 + $0x98] sm:$0xff] %vm2488, %v2431
      %2509 = vst.msk [vmem:[%s172 + $0xa0] sm:$0xff] %vm2488, %v2433
      %2510 = vst.msk [vmem:[%s172 + $0xa8] sm:$0xff] %vm2488, %v2435
      %2511 = vst.msk [vmem:[%s172 + $0xb0] sm:$0xff] %vm2488, %v2437
      %2512 = vst.msk [vmem:[%s172 + $0xb8] sm:$0xff] %vm2488, %v2439
      %2513 = vst.msk [vmem:[%s172 + $0xc0] sm:$0xff] %vm2488, %v2441
      %2514 = vst.msk [vmem:[%s172 + $0xc8] sm:$0xff] %vm2488, %v2443
      %2515 = vst.msk [vmem:[%s172 + $0xd0] sm:$0xff] %vm2488, %v2445
      %2516 = vst.msk [vmem:[%s172 + $0xd8] sm:$0xff] %vm2488, %v2447
      %2517 = vst.msk [vmem:[%s172 + $0xe0] sm:$0xff] %vm2488, %v2449
      %2518 = vst.msk [vmem:[%s172 + $0xe8] sm:$0xff] %vm2488, %v2451
      %2519 = vst.msk [vmem:[%s172 + $0xf0] sm:$0xff] %vm2488, %v2453
      %2520 = vst.msk [vmem:[%s172 + $0xf8] sm:$0xff] %vm2488, %v2455
      %s2521 = smul.u32 32, %s14
      %p2522 = scmp.lt.s32.totalorder %s2521, 63
      %s2523 = scalar_select %p2522, %s2521, 63
      %s2524 = smul.addr %s2523, 8
      %s2525 = scalar_lea.vmem %s3, %s2524
      // Predicated region
      $region33: #{flatten_net_forward.1} parent=31 // pred_check
        %p2526 = pneg %p100
      $region34: #{flatten_net_forward.1} parent=31 // pred_check_branch
        %2528 = sbr.rel (%p2526) target = $region36
      $region35: #{flatten_net_forward.1} parent=31 // pred_region
        %s2529 = smul.u32 32, %s14
      $region36: #{flatten_net_forward.1} parent=31 // pred_fallthru
        _
    $region32: #{flatten_net_forward.1} parent=5 // pred_fallthru
      _
    %p2530 = scmp.le.s32.totalorder 2, %s9
    // Predicated region
    $region37: #{flatten_net_forward.1} parent=5 // pred_check
      %p2531 = pneg %p2530
    $region38: #{flatten_net_forward.1} parent=5 // pred_check_branch
      %2533 = sbr.rel (%p2531) target = $region40
    $region39: #{flatten_net_forward.1} parent=5 // pred_region
      %s2534 = ssub.s32 %s9, 2
      // Predicated region
      $region41: #{flatten_net_forward.1} parent=39 // pred_check
        %p2535 = pneg %p106
      $region42: #{flatten_net_forward.1} parent=39 // pred_check_branch
        %2537 = sbr.rel (%p2535) target = $region44
      $region43: #{flatten_net_forward.1} parent=39 // pred_region
        %s2538 = smul.u32 32, %s15
        %p2539 = scmp.lt.s32.totalorder %s2538, 63
        %s2540 = scalar_select %p2539, %s2538, 63
        %s2541 = smul.addr %s2540, 8
        %s2542 = scalar_lea.vmem %s3, %s2541
      $region44: #{flatten_net_forward.1} parent=39 // pred_fallthru
        _
    $region40: #{flatten_net_forward.1} parent=5 // pred_fallthru
      _
  $region6: #{flatten_net_forward.1} parent=0 // loop_footer
    %s13 = sadd.s32 1, %s9
  $region7: #{flatten_net_forward.1} parent=0 // loop_footer_branch
    %8 = sbr.rel target = $region3
  $region8: #{flatten_net_forward.1} parent=0 // loop_exit
    _

</llo_original>
